<compile_context>
chip_gen: v7x
topology: tpu7x:2x2x1
jax: 0.10.0
libtpu: 0.0.40
codegen_flags: <defaults>
</compile_context>

<pallas_src>
import jax
import jax.numpy as jnp
from jax import lax
from jax.experimental import pallas as pl
from jax.experimental.pallas import tpu as pltpu

HIDDEN = 64
INPUT = 40
OUT = 2
OUT_PAD = 128     # lane-dense padded head output width
B_BLK = 8         # batch tile (f32 sublane count); per-grid-step batch rows


def lstm_kernel(x_ref,      # (1, T*B_BLK, INPUT)  time-major within the batch block
                wih_ref,    # (INPUT, 4H)          transposed W_ih
                whh_ref,    # (H, 4H)              transposed W_hh
                b_ref,      # (1, 4H)              b_ih + b_hh
                w1_ref,     # (H, H)               transposed fc1 weight
                b1_ref,     # (1, H)
                w2_ref,     # (H, OUT_PAD)         transposed fc2 weight, zero-padded
                b2_ref,     # (1, OUT_PAD)         fc2 bias, zero-padded
                out_ref):   # (B_BLK, OUT_PAD)
    H = HIDDEN
    x_all = x_ref[0]                           # (T*B_BLK, INPUT)
    T = x_all.shape[0] // B_BLK

    # Hoisted input projection for all timesteps: one well-shaped MXU call,
    # bias added once (off the serial recurrence path).
    xp = (jnp.dot(x_all, wih_ref[...], preferred_element_type=jnp.float32)
          + b_ref[...])                        # (T*B_BLK, 4H)

    whh = whh_ref[...]                         # (H, 4H), loaded once

    # Constant lane mask: tanh applies to the 'g' gate lanes [2H, 3H)
    lane = lax.broadcasted_iota(jnp.int32, (B_BLK, 4 * H), 1)
    g_lanes = (lane >= 2 * H) & (lane < 3 * H)

    h = jnp.zeros((B_BLK, H), jnp.float32)
    c = jnp.zeros((B_BLK, H), jnp.float32)

    # Fully unrolled recurrence (T is small & static); h/c stay in vregs.
    for t in range(T):
        gates = xp[t * B_BLK:(t + 1) * B_BLK, :] + jnp.dot(
            h, whh, preferred_element_type=jnp.float32)        # (B_BLK, 4H)
        # EUP nonlinearities over the full slab + lane select (PyTorch order i,f,g,o)
        act = jnp.where(g_lanes, jnp.tanh(gates), jax.nn.sigmoid(gates))
        i_g = act[:, 0 * H:1 * H]
        f_g = act[:, 1 * H:2 * H]
        g_g = act[:, 2 * H:3 * H]
        o_g = act[:, 3 * H:4 * H]
        c = f_g * c + i_g * g_g
        h = o_g * jnp.tanh(c)

    # Head on last hidden state: fc1 -> relu -> fc2 (lane-dense padded output)
    z = jnp.maximum(
        jnp.dot(h, w1_ref[...], preferred_element_type=jnp.float32) + b1_ref[...],
        0.0)
    out_ref[...] = (jnp.dot(z, w2_ref[...], preferred_element_type=jnp.float32)
                    + b2_ref[...])


def lstm_model_forward(x, params):
    """x: (B, T, INPUT) float32, batch_first (same as the PyTorch module)."""
    B, T, F = x.shape
    assert F == INPUT

    # Pad batch up to a multiple of the sublane-aligned batch tile.
    B_pad = ((B + B_BLK - 1) // B_BLK) * B_BLK
    n_blk = B_pad // B_BLK
    x_p = jnp.pad(x, ((0, B_pad - B), (0, 0), (0, 0)))          # (B_pad, T, F)

    # Group batch into blocks; time-major inside each block so the per-block
    # rows are (t, within-block batch) => row = t*B_BLK + j.
    x_blk = (x_p.reshape(n_blk, B_BLK, T, F)
                 .transpose(0, 2, 1, 3)                         # (n_blk, T, B_BLK, F)
                 .reshape(n_blk, T * B_BLK, F))

    wih_t = params["w_ih"].T                                    # (INPUT, 4H)
    whh_t = params["w_hh"].T                                    # (H, 4H)
    b = (params["b_ih"] + params["b_hh"]).reshape(1, 4 * HIDDEN)
    w1_t = params["w1"].T                                       # (H, H)
    b1 = params["b1"].reshape(1, HIDDEN)
    # Zero-pad fc2 to a lane-dense 128-wide output block.
    w2_t = jnp.zeros((HIDDEN, OUT_PAD), jnp.float32).at[:, :OUT].set(params["w2"].T)
    b2 = jnp.zeros((1, OUT_PAD), jnp.float32).at[:, :OUT].set(
        params["b2"].reshape(1, OUT))

    rep = lambda bidx: (0, 0)   # weights replicated across batch blocks

    out_pad = pl.pallas_call(
        lstm_kernel,
        out_shape=jax.ShapeDtypeStruct((B_pad, OUT_PAD), jnp.float32),
        grid_spec=pltpu.PrefetchScalarGridSpec(
            num_scalar_prefetch=0,
            grid=(n_blk,),
            in_specs=[
                pl.BlockSpec((1, T * B_BLK, INPUT), lambda bidx: (bidx, 0, 0)),
                pl.BlockSpec((INPUT, 4 * HIDDEN), rep),
                pl.BlockSpec((HIDDEN, 4 * HIDDEN), rep),
                pl.BlockSpec((1, 4 * HIDDEN), rep),
                pl.BlockSpec((HIDDEN, HIDDEN), rep),
                pl.BlockSpec((1, HIDDEN), rep),
                pl.BlockSpec((HIDDEN, OUT_PAD), rep),
                pl.BlockSpec((1, OUT_PAD), rep),
            ],
            out_specs=pl.BlockSpec((B_BLK, OUT_PAD), lambda bidx: (bidx, 0)),
        ),
        compiler_params=pltpu.CompilerParams(
            dimension_semantics=("parallel",)),
    )(x_blk, wih_t, whh_t, b, w1_t, b1, w2_t, b2)

    return out_pad[:B, :OUT]


def ref_forward(x, p):
    """Plain-JAX reference matching PyTorch semantics (for sanity check)."""
    B, T, F = x.shape
    h = jnp.zeros((B, HIDDEN), jnp.float32)
    c = jnp.zeros((B, HIDDEN), jnp.float32)
    for t in range(T):
        gates = x[:, t, :] @ p["w_ih"].T + p["b_ih"] + h @ p["w_hh"].T + p["b_hh"]
        i_g, f_g, g_g, o_g = jnp.split(gates, 4, axis=1)
        i_g = jax.nn.sigmoid(i_g)
        f_g = jax.nn.sigmoid(f_g)
        g_g = jnp.tanh(g_g)
        o_g = jax.nn.sigmoid(o_g)
        c = f_g * c + i_g * g_g
        h = o_g * jnp.tanh(c)
    z = jnp.maximum(h @ p["w1"].T + p["b1"], 0.0)
    return z @ p["w2"].T + p["b2"]


def init_params(key):
    """Deterministic init mimicking PyTorch default uniform(-1/sqrt(H), 1/sqrt(H))."""
    ks = jax.random.split(key, 8)
    s = 1.0 / jnp.sqrt(jnp.float32(HIDDEN))
    u = lambda k, shape: jax.random.uniform(k, shape, jnp.float32, -s, s)
    return {
        "w_ih": u(ks[0], (4 * HIDDEN, INPUT)),
        "w_hh": u(ks[1], (4 * HIDDEN, HIDDEN)),
        "b_ih": u(ks[2], (4 * HIDDEN,)),
        "b_hh": u(ks[3], (4 * HIDDEN,)),
        "w1":   u(ks[4], (HIDDEN, HIDDEN)),
        "b1":   u(ks[5], (HIDDEN,)),
        "w2":   u(ks[6], (OUT, HIDDEN)),
        "b2":   u(ks[7], (OUT,)),
    }


if __name__ == "__main__":
    key = jax.random.PRNGKey(0)
    k_x, k_p = jax.random.split(key)

    B, T = 2, 8
    x = jax.random.normal(k_x, (B, T, INPUT), jnp.float32)
    params = init_params(k_p)

    out = lstm_model_forward(x, params)
    out = jax.block_until_ready(out)

    ref = ref_forward(x, params)
    assert out.shape == (B, OUT)
    assert jnp.allclose(out, ref, atol=1e-5, rtol=1e-5), (out, ref)

    print("KERNEL_OK")
</pallas_src>

<mosaic_0001>
module attributes {stable_mosaic.version = 11 : i64} {
  func.func @lstm_kernel(%arg0: i32, %arg1: memref<1x64x40xf32, #tpu.memory_space<vmem>>, %arg2: memref<40x256xf32, #tpu.memory_space<vmem>>, %arg3: memref<64x256xf32, #tpu.memory_space<vmem>>, %arg4: memref<1x256xf32, #tpu.memory_space<vmem>>, %arg5: memref<64x64xf32, #tpu.memory_space<vmem>>, %arg6: memref<1x64xf32, #tpu.memory_space<vmem>>, %arg7: memref<64x128xf32, #tpu.memory_space<vmem>>, %arg8: memref<1x128xf32, #tpu.memory_space<vmem>>, %arg9: memref<8x128xf32, #tpu.memory_space<vmem>>) attributes {dimension_semantics = [#tpu.dimension_semantics<parallel>], iteration_bounds = array<i64: 1>, scalar_prefetch = 0 : i64, scratch_operands = 0 : i64, tpu.core_type = #tpu.core_type<tc>, window_params = [{transform_indices = @transform_0, window_bounds = array<i64: 1, 64, 40>}, {pipeline_mode = #tpu.pipeline_mode<synchronous>, transform_indices = @transform_1, window_bounds = array<i64: 40, 256>}, {pipeline_mode = #tpu.pipeline_mode<synchronous>, transform_indices = @transform_2, window_bounds = array<i64: 64, 256>}, {pipeline_mode = #tpu.pipeline_mode<synchronous>, transform_indices = @transform_3, window_bounds = array<i64: 1, 256>}, {pipeline_mode = #tpu.pipeline_mode<synchronous>, transform_indices = @transform_4, window_bounds = array<i64: 64, 64>}, {pipeline_mode = #tpu.pipeline_mode<synchronous>, transform_indices = @transform_5, window_bounds = array<i64: 1, 64>}, {pipeline_mode = #tpu.pipeline_mode<synchronous>, transform_indices = @transform_6, window_bounds = array<i64: 64, 128>}, {pipeline_mode = #tpu.pipeline_mode<synchronous>, transform_indices = @transform_7, window_bounds = array<i64: 1, 128>}, {transform_indices = @transform_8, window_bounds = array<i64: 8, 128>}]} {
    %c0 = arith.constant 0 : index
    %c0_0 = arith.constant 0 : index
    %c0_1 = arith.constant 0 : index
    %0 = vector.load %arg1[%c0, %c0_0, %c0_1] : memref<1x64x40xf32, #tpu.memory_space<vmem>>, vector<1x64x40xf32>
    %1 = vector.shape_cast %0 : vector<1x64x40xf32> to vector<64x40xf32>
    %c0_2 = arith.constant 0 : index
    %c0_3 = arith.constant 0 : index
    %2 = vector.load %arg2[%c0_2, %c0_3] : memref<40x256xf32, #tpu.memory_space<vmem>>, vector<40x256xf32>
    %cst = arith.constant dense<0.000000e+00> : vector<64x256xf32>
    %3 = tpu.matmul %1, %2, %cst {dimension_numbers = #tpu.dot_dimension_numbers<[1], [0], [0], [1], [0, 0, 1, 1], [], []>} : vector<64x40xf32>, vector<40x256xf32>, vector<64x256xf32> -> vector<64x256xf32>
    %c0_4 = arith.constant 0 : index
    %c0_5 = arith.constant 0 : index
    %4 = vector.load %arg4[%c0_4, %c0_5] : memref<1x256xf32, #tpu.memory_space<vmem>>, vector<1x256xf32>
    %5 = vector.broadcast %4 : vector<1x256xf32> to vector<64x256xf32>
    %6 = arith.addf %3, %5 : vector<64x256xf32>
    %c0_6 = arith.constant 0 : index
    %c0_7 = arith.constant 0 : index
    %7 = vector.load %arg3[%c0_6, %c0_7] : memref<64x256xf32, #tpu.memory_space<vmem>>, vector<64x256xf32>
    %8 = tpu.iota {dimensions = array<i32: 1>} : vector<8x256xi32>
    %c128_i32 = arith.constant 128 : i32
    %9 = vector.broadcast %c128_i32 : i32 to vector<8x256xi32>
    %10 = arith.cmpi sge, %8, %9 : vector<8x256xi32>
    %c192_i32 = arith.constant 192 : i32
    %11 = vector.broadcast %c192_i32 : i32 to vector<8x256xi32>
    %12 = arith.cmpi slt, %8, %11 : vector<8x256xi32>
    %13 = arith.andi %10, %12 : vector<8x256xi1>
    %cst_8 = arith.constant 0.000000e+00 : f32
    %14 = vector.broadcast %cst_8 : f32 to vector<8x64xf32>
    %cst_9 = arith.constant 0.000000e+00 : f32
    %15 = vector.broadcast %cst_9 : f32 to vector<8x64xf32>
    %16 = vector.extract_strided_slice %6 {offsets = [0, 0], sizes = [8, 256], strides = [1, 1]} : vector<64x256xf32> to vector<8x256xf32>
    %cst_10 = arith.constant dense<0.000000e+00> : vector<8x256xf32>
    %17 = tpu.matmul %14, %7, %cst_10 {dimension_numbers = #tpu.dot_dimension_numbers<[1], [0], [0], [1], [0, 0, 1, 1], [], []>} : vector<8x64xf32>, vector<64x256xf32>, vector<8x256xf32> -> vector<8x256xf32>
    %18 = arith.addf %16, %17 : vector<8x256xf32>
    %19 = math.tanh %18 : vector<8x256xf32>
    %20 = arith.negf %18 : vector<8x256xf32>
    %21 = math.exp %20 : vector<8x256xf32>
    %cst_11 = arith.constant 1.000000e+00 : f32
    %22 = vector.broadcast %cst_11 : f32 to vector<8x256xf32>
    %23 = arith.addf %22, %21 : vector<8x256xf32>
    %24 = arith.divf %22, %23 : vector<8x256xf32>
    %25 = arith.select %13, %19, %24 : vector<8x256xi1>, vector<8x256xf32>
    %26 = vector.extract_strided_slice %25 {offsets = [0, 0], sizes = [8, 64], strides = [1, 1]} : vector<8x256xf32> to vector<8x64xf32>
    %27 = vector.extract_strided_slice %25 {offsets = [0, 64], sizes = [8, 64], strides = [1, 1]} : vector<8x256xf32> to vector<8x64xf32>
    %28 = vector.extract_strided_slice %25 {offsets = [0, 128], sizes = [8, 64], strides = [1, 1]} : vector<8x256xf32> to vector<8x64xf32>
    %29 = vector.extract_strided_slice %25 {offsets = [0, 192], sizes = [8, 64], strides = [1, 1]} : vector<8x256xf32> to vector<8x64xf32>
    %30 = arith.mulf %27, %15 : vector<8x64xf32>
    %31 = arith.mulf %26, %28 : vector<8x64xf32>
    %32 = arith.addf %30, %31 : vector<8x64xf32>
    %33 = math.tanh %32 : vector<8x64xf32>
    %34 = arith.mulf %29, %33 : vector<8x64xf32>
    %35 = vector.extract_strided_slice %6 {offsets = [8, 0], sizes = [8, 256], strides = [1, 1]} : vector<64x256xf32> to vector<8x256xf32>
    %cst_12 = arith.constant dense<0.000000e+00> : vector<8x256xf32>
    %36 = tpu.matmul %34, %7, %cst_12 {dimension_numbers = #tpu.dot_dimension_numbers<[1], [0], [0], [1], [0, 0, 1, 1], [], []>} : vector<8x64xf32>, vector<64x256xf32>, vector<8x256xf32> -> vector<8x256xf32>
    %37 = arith.addf %35, %36 : vector<8x256xf32>
    %38 = math.tanh %37 : vector<8x256xf32>
    %39 = arith.negf %37 : vector<8x256xf32>
    %40 = math.exp %39 : vector<8x256xf32>
    %cst_13 = arith.constant 1.000000e+00 : f32
    %41 = vector.broadcast %cst_13 : f32 to vector<8x256xf32>
    %42 = arith.addf %41, %40 : vector<8x256xf32>
    %43 = arith.divf %41, %42 : vector<8x256xf32>
    %44 = arith.select %13, %38, %43 : vector<8x256xi1>, vector<8x256xf32>
    %45 = vector.extract_strided_slice %44 {offsets = [0, 0], sizes = [8, 64], strides = [1, 1]} : vector<8x256xf32> to vector<8x64xf32>
    %46 = vector.extract_strided_slice %44 {offsets = [0, 64], sizes = [8, 64], strides = [1, 1]} : vector<8x256xf32> to vector<8x64xf32>
    %47 = vector.extract_strided_slice %44 {offsets = [0, 128], sizes = [8, 64], strides = [1, 1]} : vector<8x256xf32> to vector<8x64xf32>
    %48 = vector.extract_strided_slice %44 {offsets = [0, 192], sizes = [8, 64], strides = [1, 1]} : vector<8x256xf32> to vector<8x64xf32>
    %49 = arith.mulf %46, %32 : vector<8x64xf32>
    %50 = arith.mulf %45, %47 : vector<8x64xf32>
    %51 = arith.addf %49, %50 : vector<8x64xf32>
    %52 = math.tanh %51 : vector<8x64xf32>
    %53 = arith.mulf %48, %52 : vector<8x64xf32>
    %54 = vector.extract_strided_slice %6 {offsets = [16, 0], sizes = [8, 256], strides = [1, 1]} : vector<64x256xf32> to vector<8x256xf32>
    %cst_14 = arith.constant dense<0.000000e+00> : vector<8x256xf32>
    %55 = tpu.matmul %53, %7, %cst_14 {dimension_numbers = #tpu.dot_dimension_numbers<[1], [0], [0], [1], [0, 0, 1, 1], [], []>} : vector<8x64xf32>, vector<64x256xf32>, vector<8x256xf32> -> vector<8x256xf32>
    %56 = arith.addf %54, %55 : vector<8x256xf32>
    %57 = math.tanh %56 : vector<8x256xf32>
    %58 = arith.negf %56 : vector<8x256xf32>
    %59 = math.exp %58 : vector<8x256xf32>
    %cst_15 = arith.constant 1.000000e+00 : f32
    %60 = vector.broadcast %cst_15 : f32 to vector<8x256xf32>
    %61 = arith.addf %60, %59 : vector<8x256xf32>
    %62 = arith.divf %60, %61 : vector<8x256xf32>
    %63 = arith.select %13, %57, %62 : vector<8x256xi1>, vector<8x256xf32>
    %64 = vector.extract_strided_slice %63 {offsets = [0, 0], sizes = [8, 64], strides = [1, 1]} : vector<8x256xf32> to vector<8x64xf32>
    %65 = vector.extract_strided_slice %63 {offsets = [0, 64], sizes = [8, 64], strides = [1, 1]} : vector<8x256xf32> to vector<8x64xf32>
    %66 = vector.extract_strided_slice %63 {offsets = [0, 128], sizes = [8, 64], strides = [1, 1]} : vector<8x256xf32> to vector<8x64xf32>
    %67 = vector.extract_strided_slice %63 {offsets = [0, 192], sizes = [8, 64], strides = [1, 1]} : vector<8x256xf32> to vector<8x64xf32>
    %68 = arith.mulf %65, %51 : vector<8x64xf32>
    %69 = arith.mulf %64, %66 : vector<8x64xf32>
    %70 = arith.addf %68, %69 : vector<8x64xf32>
    %71 = math.tanh %70 : vector<8x64xf32>
    %72 = arith.mulf %67, %71 : vector<8x64xf32>
    %73 = vector.extract_strided_slice %6 {offsets = [24, 0], sizes = [8, 256], strides = [1, 1]} : vector<64x256xf32> to vector<8x256xf32>
    %cst_16 = arith.constant dense<0.000000e+00> : vector<8x256xf32>
    %74 = tpu.matmul %72, %7, %cst_16 {dimension_numbers = #tpu.dot_dimension_numbers<[1], [0], [0], [1], [0, 0, 1, 1], [], []>} : vector<8x64xf32>, vector<64x256xf32>, vector<8x256xf32> -> vector<8x256xf32>
    %75 = arith.addf %73, %74 : vector<8x256xf32>
    %76 = math.tanh %75 : vector<8x256xf32>
    %77 = arith.negf %75 : vector<8x256xf32>
    %78 = math.exp %77 : vector<8x256xf32>
    %cst_17 = arith.constant 1.000000e+00 : f32
    %79 = vector.broadcast %cst_17 : f32 to vector<8x256xf32>
    %80 = arith.addf %79, %78 : vector<8x256xf32>
    %81 = arith.divf %79, %80 : vector<8x256xf32>
    %82 = arith.select %13, %76, %81 : vector<8x256xi1>, vector<8x256xf32>
    %83 = vector.extract_strided_slice %82 {offsets = [0, 0], sizes = [8, 64], strides = [1, 1]} : vector<8x256xf32> to vector<8x64xf32>
    %84 = vector.extract_strided_slice %82 {offsets = [0, 64], sizes = [8, 64], strides = [1, 1]} : vector<8x256xf32> to vector<8x64xf32>
    %85 = vector.extract_strided_slice %82 {offsets = [0, 128], sizes = [8, 64], strides = [1, 1]} : vector<8x256xf32> to vector<8x64xf32>
    %86 = vector.extract_strided_slice %82 {offsets = [0, 192], sizes = [8, 64], strides = [1, 1]} : vector<8x256xf32> to vector<8x64xf32>
    %87 = arith.mulf %84, %70 : vector<8x64xf32>
    %88 = arith.mulf %83, %85 : vector<8x64xf32>
    %89 = arith.addf %87, %88 : vector<8x64xf32>
    %90 = math.tanh %89 : vector<8x64xf32>
    %91 = arith.mulf %86, %90 : vector<8x64xf32>
    %92 = vector.extract_strided_slice %6 {offsets = [32, 0], sizes = [8, 256], strides = [1, 1]} : vector<64x256xf32> to vector<8x256xf32>
    %cst_18 = arith.constant dense<0.000000e+00> : vector<8x256xf32>
    %93 = tpu.matmul %91, %7, %cst_18 {dimension_numbers = #tpu.dot_dimension_numbers<[1], [0], [0], [1], [0, 0, 1, 1], [], []>} : vector<8x64xf32>, vector<64x256xf32>, vector<8x256xf32> -> vector<8x256xf32>
    %94 = arith.addf %92, %93 : vector<8x256xf32>
    %95 = math.tanh %94 : vector<8x256xf32>
    %96 = arith.negf %94 : vector<8x256xf32>
    %97 = math.exp %96 : vector<8x256xf32>
    %cst_19 = arith.constant 1.000000e+00 : f32
    %98 = vector.broadcast %cst_19 : f32 to vector<8x256xf32>
    %99 = arith.addf %98, %97 : vector<8x256xf32>
    %100 = arith.divf %98, %99 : vector<8x256xf32>
    %101 = arith.select %13, %95, %100 : vector<8x256xi1>, vector<8x256xf32>
    %102 = vector.extract_strided_slice %101 {offsets = [0, 0], sizes = [8, 64], strides = [1, 1]} : vector<8x256xf32> to vector<8x64xf32>
    %103 = vector.extract_strided_slice %101 {offsets = [0, 64], sizes = [8, 64], strides = [1, 1]} : vector<8x256xf32> to vector<8x64xf32>
    %104 = vector.extract_strided_slice %101 {offsets = [0, 128], sizes = [8, 64], strides = [1, 1]} : vector<8x256xf32> to vector<8x64xf32>
    %105 = vector.extract_strided_slice %101 {offsets = [0, 192], sizes = [8, 64], strides = [1, 1]} : vector<8x256xf32> to vector<8x64xf32>
    %106 = arith.mulf %103, %89 : vector<8x64xf32>
    %107 = arith.mulf %102, %104 : vector<8x64xf32>
    %108 = arith.addf %106, %107 : vector<8x64xf32>
    %109 = math.tanh %108 : vector<8x64xf32>
    %110 = arith.mulf %105, %109 : vector<8x64xf32>
    %111 = vector.extract_strided_slice %6 {offsets = [40, 0], sizes = [8, 256], strides = [1, 1]} : vector<64x256xf32> to vector<8x256xf32>
    %cst_20 = arith.constant dense<0.000000e+00> : vector<8x256xf32>
    %112 = tpu.matmul %110, %7, %cst_20 {dimension_numbers = #tpu.dot_dimension_numbers<[1], [0], [0], [1], [0, 0, 1, 1], [], []>} : vector<8x64xf32>, vector<64x256xf32>, vector<8x256xf32> -> vector<8x256xf32>
    %113 = arith.addf %111, %112 : vector<8x256xf32>
    %114 = math.tanh %113 : vector<8x256xf32>
    %115 = arith.negf %113 : vector<8x256xf32>
    %116 = math.exp %115 : vector<8x256xf32>
    %cst_21 = arith.constant 1.000000e+00 : f32
    %117 = vector.broadcast %cst_21 : f32 to vector<8x256xf32>
    %118 = arith.addf %117, %116 : vector<8x256xf32>
    %119 = arith.divf %117, %118 : vector<8x256xf32>
    %120 = arith.select %13, %114, %119 : vector<8x256xi1>, vector<8x256xf32>
    %121 = vector.extract_strided_slice %120 {offsets = [0, 0], sizes = [8, 64], strides = [1, 1]} : vector<8x256xf32> to vector<8x64xf32>
    %122 = vector.extract_strided_slice %120 {offsets = [0, 64], sizes = [8, 64], strides = [1, 1]} : vector<8x256xf32> to vector<8x64xf32>
    %123 = vector.extract_strided_slice %120 {offsets = [0, 128], sizes = [8, 64], strides = [1, 1]} : vector<8x256xf32> to vector<8x64xf32>
    %124 = vector.extract_strided_slice %120 {offsets = [0, 192], sizes = [8, 64], strides = [1, 1]} : vector<8x256xf32> to vector<8x64xf32>
    %125 = arith.mulf %122, %108 : vector<8x64xf32>
    %126 = arith.mulf %121, %123 : vector<8x64xf32>
    %127 = arith.addf %125, %126 : vector<8x64xf32>
    %128 = math.tanh %127 : vector<8x64xf32>
    %129 = arith.mulf %124, %128 : vector<8x64xf32>
    %130 = vector.extract_strided_slice %6 {offsets = [48, 0], sizes = [8, 256], strides = [1, 1]} : vector<64x256xf32> to vector<8x256xf32>
    %cst_22 = arith.constant dense<0.000000e+00> : vector<8x256xf32>
    %131 = tpu.matmul %129, %7, %cst_22 {dimension_numbers = #tpu.dot_dimension_numbers<[1], [0], [0], [1], [0, 0, 1, 1], [], []>} : vector<8x64xf32>, vector<64x256xf32>, vector<8x256xf32> -> vector<8x256xf32>
    %132 = arith.addf %130, %131 : vector<8x256xf32>
    %133 = math.tanh %132 : vector<8x256xf32>
    %134 = arith.negf %132 : vector<8x256xf32>
    %135 = math.exp %134 : vector<8x256xf32>
    %cst_23 = arith.constant 1.000000e+00 : f32
    %136 = vector.broadcast %cst_23 : f32 to vector<8x256xf32>
    %137 = arith.addf %136, %135 : vector<8x256xf32>
    %138 = arith.divf %136, %137 : vector<8x256xf32>
    %139 = arith.select %13, %133, %138 : vector<8x256xi1>, vector<8x256xf32>
    %140 = vector.extract_strided_slice %139 {offsets = [0, 0], sizes = [8, 64], strides = [1, 1]} : vector<8x256xf32> to vector<8x64xf32>
    %141 = vector.extract_strided_slice %139 {offsets = [0, 64], sizes = [8, 64], strides = [1, 1]} : vector<8x256xf32> to vector<8x64xf32>
    %142 = vector.extract_strided_slice %139 {offsets = [0, 128], sizes = [8, 64], strides = [1, 1]} : vector<8x256xf32> to vector<8x64xf32>
    %143 = vector.extract_strided_slice %139 {offsets = [0, 192], sizes = [8, 64], strides = [1, 1]} : vector<8x256xf32> to vector<8x64xf32>
    %144 = arith.mulf %141, %127 : vector<8x64xf32>
    %145 = arith.mulf %140, %142 : vector<8x64xf32>
    %146 = arith.addf %144, %145 : vector<8x64xf32>
    %147 = math.tanh %146 : vector<8x64xf32>
    %148 = arith.mulf %143, %147 : vector<8x64xf32>
    %149 = vector.extract_strided_slice %6 {offsets = [56, 0], sizes = [8, 256], strides = [1, 1]} : vector<64x256xf32> to vector<8x256xf32>
    %cst_24 = arith.constant dense<0.000000e+00> : vector<8x256xf32>
    %150 = tpu.matmul %148, %7, %cst_24 {dimension_numbers = #tpu.dot_dimension_numbers<[1], [0], [0], [1], [0, 0, 1, 1], [], []>} : vector<8x64xf32>, vector<64x256xf32>, vector<8x256xf32> -> vector<8x256xf32>
    %151 = arith.addf %149, %150 : vector<8x256xf32>
    %152 = math.tanh %151 : vector<8x256xf32>
    %153 = arith.negf %151 : vector<8x256xf32>
    %154 = math.exp %153 : vector<8x256xf32>
    %cst_25 = arith.constant 1.000000e+00 : f32
    %155 = vector.broadcast %cst_25 : f32 to vector<8x256xf32>
    %156 = arith.addf %155, %154 : vector<8x256xf32>
    %157 = arith.divf %155, %156 : vector<8x256xf32>
    %158 = arith.select %13, %152, %157 : vector<8x256xi1>, vector<8x256xf32>
    %159 = vector.extract_strided_slice %158 {offsets = [0, 0], sizes = [8, 64], strides = [1, 1]} : vector<8x256xf32> to vector<8x64xf32>
    %160 = vector.extract_strided_slice %158 {offsets = [0, 64], sizes = [8, 64], strides = [1, 1]} : vector<8x256xf32> to vector<8x64xf32>
    %161 = vector.extract_strided_slice %158 {offsets = [0, 128], sizes = [8, 64], strides = [1, 1]} : vector<8x256xf32> to vector<8x64xf32>
    %162 = vector.extract_strided_slice %158 {offsets = [0, 192], sizes = [8, 64], strides = [1, 1]} : vector<8x256xf32> to vector<8x64xf32>
    %163 = arith.mulf %160, %146 : vector<8x64xf32>
    %164 = arith.mulf %159, %161 : vector<8x64xf32>
    %165 = arith.addf %163, %164 : vector<8x64xf32>
    %166 = math.tanh %165 : vector<8x64xf32>
    %167 = arith.mulf %162, %166 : vector<8x64xf32>
    %c0_26 = arith.constant 0 : index
    %c0_27 = arith.constant 0 : index
    %168 = vector.load %arg5[%c0_26, %c0_27] : memref<64x64xf32, #tpu.memory_space<vmem>>, vector<64x64xf32>
    %cst_28 = arith.constant dense<0.000000e+00> : vector<8x64xf32>
    %169 = tpu.matmul %167, %168, %cst_28 {dimension_numbers = #tpu.dot_dimension_numbers<[1], [0], [0], [1], [0, 0, 1, 1], [], []>} : vector<8x64xf32>, vector<64x64xf32>, vector<8x64xf32> -> vector<8x64xf32>
    %c0_29 = arith.constant 0 : index
    %c0_30 = arith.constant 0 : index
    %170 = vector.load %arg6[%c0_29, %c0_30] : memref<1x64xf32, #tpu.memory_space<vmem>>, vector<1x64xf32>
    %171 = vector.broadcast %170 : vector<1x64xf32> to vector<8x64xf32>
    %172 = arith.addf %169, %171 : vector<8x64xf32>
    %cst_31 = arith.constant 0.000000e+00 : f32
    %173 = vector.broadcast %cst_31 : f32 to vector<8x64xf32>
    %174 = arith.maximumf %172, %173 : vector<8x64xf32>
    %c0_32 = arith.constant 0 : index
    %c0_33 = arith.constant 0 : index
    %175 = vector.load %arg7[%c0_32, %c0_33] : memref<64x128xf32, #tpu.memory_space<vmem>>, vector<64x128xf32>
    %cst_34 = arith.constant dense<0.000000e+00> : vector<8x128xf32>
    %176 = tpu.matmul %174, %175, %cst_34 {dimension_numbers = #tpu.dot_dimension_numbers<[1], [0], [0], [1], [0, 0, 1, 1], [], []>} : vector<8x64xf32>, vector<64x128xf32>, vector<8x128xf32> -> vector<8x128xf32>
    %c0_35 = arith.constant 0 : index
    %c0_36 = arith.constant 0 : index
    %177 = vector.load %arg8[%c0_35, %c0_36] : memref<1x128xf32, #tpu.memory_space<vmem>>, vector<1x128xf32>
    %178 = vector.broadcast %177 : vector<1x128xf32> to vector<8x128xf32>
    %179 = arith.addf %176, %178 : vector<8x128xf32>
    %c0_37 = arith.constant 0 : index
    %c0_38 = arith.constant 0 : index
    %180 = vector.load %arg9[%c0_37, %c0_38] : memref<8x128xf32, #tpu.memory_space<vmem>>, vector<8x128xf32>
    tpu.vector_store %arg9[%c0_37, %c0_38], %179 {strides = array<i32>} : memref<8x128xf32, #tpu.memory_space<vmem>>, vector<8x128xf32>,
    return
  }
  func.func @transform_0(%arg0: i32) -> (i32, i32, i32) {
    %c0_i32 = arith.constant 0 : i32
    %c0_i32_0 = arith.constant 0 : i32
    %c0_i32_1 = arith.constant 0 : i32
    return %arg0, %c0_i32, %c0_i32_0 : i32, i32, i32
  }
  func.func @transform_1(%arg0: i32) -> (i32, i32) {
    %c0_i32 = arith.constant 0 : i32
    %c0_i32_0 = arith.constant 0 : i32
    %c0_i32_1 = arith.constant 0 : i32
    return %c0_i32, %c0_i32_0 : i32, i32
  }
  func.func @transform_2(%arg0: i32) -> (i32, i32) {
    %c0_i32 = arith.constant 0 : i32
    %c0_i32_0 = arith.constant 0 : i32
    %c0_i32_1 = arith.constant 0 : i32
    return %c0_i32, %c0_i32_0 : i32, i32
  }
  func.func @transform_3(%arg0: i32) -> (i32, i32) {
    %c0_i32 = arith.constant 0 : i32
    %c0_i32_0 = arith.constant 0 : i32
    %c0_i32_1 = arith.constant 0 : i32
    return %c0_i32, %c0_i32_0 : i32, i32
  }
  func.func @transform_4(%arg0: i32) -> (i32, i32) {
    %c0_i32 = arith.constant 0 : i32
    %c0_i32_0 = arith.constant 0 : i32
    %c0_i32_1 = arith.constant 0 : i32
    return %c0_i32, %c0_i32_0 : i32, i32
  }
  func.func @transform_5(%arg0: i32) -> (i32, i32) {
    %c0_i32 = arith.constant 0 : i32
    %c0_i32_0 = arith.constant 0 : i32
    %c0_i32_1 = arith.constant 0 : i32
    return %c0_i32, %c0_i32_0 : i32, i32
  }
  func.func @transform_6(%arg0: i32) -> (i32, i32) {
    %c0_i32 = arith.constant 0 : i32
    %c0_i32_0 = arith.constant 0 : i32
    %c0_i32_1 = arith.constant 0 : i32
    return %c0_i32, %c0_i32_0 : i32, i32
  }
  func.func @transform_7(%arg0: i32) -> (i32, i32) {
    %c0_i32 = arith.constant 0 : i32
    %c0_i32_0 = arith.constant 0 : i32
    %c0_i32_1 = arith.constant 0 : i32
    return %c0_i32, %c0_i32_0 : i32, i32
  }
  func.func @transform_8(%arg0: i32) -> (i32, i32) {
    %c0_i32 = arith.constant 0 : i32
    %c0_i32_0 = arith.constant 0 : i32
    return %arg0, %c0_i32 : i32, i32
  }
}

</mosaic_0001>

<llo_original>
// kernel: tpu_custom_call.1
$region0: #{tpu_custom_call.1}
  #allocation0 [shape = 'u32[]', space=smem, size = 0x4, offset = 0x4, fixed_abs, tag = 'smem constant byte address 0x4 - core index']
  #allocation1 [shape = 'u32[144,128]{1,0:T(1,128)}', space=vmem, size = 0x12000, scoped, tag = 'internal scratch']
  %s0 = inlined_call_operand.vmem [shape: f32[1,64,40], index: 0, kind: input, shape index: {}]
  %s1 = inlined_call_operand.vmem [shape: f32[40,256], index: 1, kind: input, shape index: {}]
  %s2 = inlined_call_operand.hbm [shape: f32[64,256], index: 2, kind: input, shape index: {}]
  %s3 = inlined_call_operand.vmem [shape: f32[1,256], index: 3, kind: input, shape index: {}]
  %s4 = inlined_call_operand.hbm [shape: f32[64,64], index: 4, kind: input, shape index: {}]
  %s5 = inlined_call_operand.vmem [shape: f32[1,64], index: 5, kind: input, shape index: {}]
  %s6 = inlined_call_operand.hbm [shape: f32[64,128], index: 6, kind: input, shape index: {}]
  %s7 = inlined_call_operand.vmem [shape: f32[1,128], index: 7, kind: input, shape index: {}]
  %s8 = inlined_call_operand.hbm [shape: f32[8,128], index: 8, kind: output, shape index: {}]
  %s9 = sld [smem:[#allocation0]]
  $region54: #{tpu_custom_call.1} parent=0
    _
  %s11 = ssub.s32 1, %s9
  %s12 = scalar_select 0, %s11, %s9
  $region1: #{tpu_custom_call.1} parent=0
    #allocation2 [shape = 'u8[65536]{0}', space=vmem, size = 0x10000, scoped, tag = 'input window, operand 2, single buffered']
    #allocation3 [shape = 's32[1]{0}', space=sflag, size = 0x4, scoped, tag = 'scoped memory for tpu_custom_call.1']
    #allocation4 [shape = 's32[1]{0}', space=sflag, size = 0x4, scoped, tag = 'scoped memory for tpu_custom_call.1']
    #allocation5 [shape = 'u8[32768]{0}', space=vmem, size = 0x8000, scoped, tag = 'input window, operand 4, single buffered']
    #allocation6 [shape = 's32[1]{0}', space=sflag, size = 0x4, scoped, tag = 'scoped memory for tpu_custom_call.1']
    #allocation7 [shape = 'u8[32768]{0}', space=vmem, size = 0x8000, scoped, tag = 'input window, operand 6, single buffered']
    #allocation8 [shape = 'u8[4096]{0}', space=vmem, size = 0x1000, scoped, tag = 'output window, operand 0, single buffered']
    %13 = vsyncpa [#allocation3], 0
    %14 = vsyncpa [#allocation6], 0
    %15 = vsyncpa [#allocation4], 0
    // Predicated region
    $region2: #{tpu_custom_call.1} parent=1 // pred_check
      _
    $region3: #{tpu_custom_call.1} parent=1 // pred_check_branch
      %17 = sbr.rel (0) target = $region5
    $region4: #{tpu_custom_call.1} parent=1 // pred_region
      _
    $region5: #{tpu_custom_call.1} parent=1 // pred_fallthru
      _
    // Predicated region
    $region6: #{tpu_custom_call.1} parent=1 // pred_check
      _
    $region7: #{tpu_custom_call.1} parent=1 // pred_check_branch
      %19 = sbr.rel (0) target = $region9
    $region8: #{tpu_custom_call.1} parent=1 // pred_region
      _
    $region9: #{tpu_custom_call.1} parent=1 // pred_fallthru
      _
    // Predicated region
    $region10: #{tpu_custom_call.1} parent=1 // pred_check
      _
    $region11: #{tpu_custom_call.1} parent=1 // pred_check_branch
      %21 = sbr.rel (0) target = $region13
    $region12: #{tpu_custom_call.1} parent=1 // pred_region
      %s23 = ssub.s32 2048, 2048
      %24 = vsyncadd [#allocation3], %s23
      %s25 = sshll.u32 [#allocation2], 4
      %s26 = int_to_ptr.vmem [resolvable:$true] %s25
      %31 = dma.hbm_to_vmem [thread:$0]  %s2, 2048, %s26, [#allocation3], 256, 256, 16
    $region13: #{tpu_custom_call.1} parent=1 // pred_fallthru
      _
    // Predicated region
    $region14: #{tpu_custom_call.1} parent=1 // pred_check
      _
    $region15: #{tpu_custom_call.1} parent=1 // pred_check_branch
      %33 = sbr.rel (0) target = $region17
    $region16: #{tpu_custom_call.1} parent=1 // pred_region
      _
    $region17: #{tpu_custom_call.1} parent=1 // pred_fallthru
      _
    // Predicated region
    $region18: #{tpu_custom_call.1} parent=1 // pred_check
      _
    $region19: #{tpu_custom_call.1} parent=1 // pred_check_branch
      %35 = sbr.rel (0) target = $region21
    $region20: #{tpu_custom_call.1} parent=1 // pred_region
      %s37 = ssub.s32 1024, 1024
      %38 = vsyncadd [#allocation6], %s37
      %s39 = sshll.u32 [#allocation5], 4
      %s40 = int_to_ptr.vmem [resolvable:$true] %s39
      %45 = dma.hbm_to_vmem [thread:$0]  %s4, 1024, %s40, [#allocation6], 128, 128, 8
    $region21: #{tpu_custom_call.1} parent=1 // pred_fallthru
      _
    // Predicated region
    $region22: #{tpu_custom_call.1} parent=1 // pred_check
      _
    $region23: #{tpu_custom_call.1} parent=1 // pred_check_branch
      %47 = sbr.rel (0) target = $region25
    $region24: #{tpu_custom_call.1} parent=1 // pred_region
      _
    $region25: #{tpu_custom_call.1} parent=1 // pred_fallthru
      _
    // Predicated region
    $region26: #{tpu_custom_call.1} parent=1 // pred_check
      _
    $region27: #{tpu_custom_call.1} parent=1 // pred_check_branch
      %49 = sbr.rel (0) target = $region29
    $region28: #{tpu_custom_call.1} parent=1 // pred_region
      %s51 = ssub.s32 1024, 1024
      %52 = vsyncadd [#allocation6], %s51
      %s53 = sshll.u32 [#allocation7], 4
      %s54 = int_to_ptr.vmem [resolvable:$true] %s53
      %59 = dma.hbm_to_vmem [thread:$0]  %s6, 1024, %s54, [#allocation6], 128, 128, 8
    $region29: #{tpu_custom_call.1} parent=1 // pred_fallthru
      _
    // Predicated region
    $region30: #{tpu_custom_call.1} parent=1 // pred_check
      _
    $region31: #{tpu_custom_call.1} parent=1 // pred_check_branch
      %61 = sbr.rel (0) target = $region33
    $region32: #{tpu_custom_call.1} parent=1 // pred_region
      _
    $region33: #{tpu_custom_call.1} parent=1 // pred_fallthru
      _
    // Predicated region
    $region34: #{tpu_custom_call.1} parent=1 // pred_check
      _
    $region35: #{tpu_custom_call.1} parent=1 // pred_check_branch
      %63 = sbr.rel (0) target = $region37
    $region36: #{tpu_custom_call.1} parent=1 // pred_region
      %64 = dma.done [#allocation3], 2048
    $region37: #{tpu_custom_call.1} parent=1 // pred_fallthru
      _
    // Predicated region
    $region38: #{tpu_custom_call.1} parent=1 // pred_check
      _
    $region39: #{tpu_custom_call.1} parent=1 // pred_check_branch
      %66 = sbr.rel (0) target = $region41
    $region40: #{tpu_custom_call.1} parent=1 // pred_region
      %67 = dma.done [#allocation6], 1024
    $region41: #{tpu_custom_call.1} parent=1 // pred_fallthru
      _
    // Predicated region
    $region42: #{tpu_custom_call.1} parent=1 // pred_check
      _
    $region43: #{tpu_custom_call.1} parent=1 // pred_check_branch
      %69 = sbr.rel (0) target = $region45
    $region44: #{tpu_custom_call.1} parent=1 // pred_region
      %70 = dma.done [#allocation6], 1024
    $region45: #{tpu_custom_call.1} parent=1 // pred_fallthru
      _
    %v71 = vld [vmem:[%s0] sm:$0xff]
    %v72 = vld [vmem:[%s0 + $0x8] sm:$0xff]
    %v73 = vld [vmem:[%s0 + $0x10] sm:$0xff]
    %v74 = vld [vmem:[%s0 + $0x18] sm:$0xff]
    %v75 = vld [vmem:[%s0 + $0x20] sm:$0xff]
    %v76 = vld [vmem:[%s0 + $0x28] sm:$0xff]
    %v77 = vld [vmem:[%s0 + $0x30] sm:$0xff]
    %v78 = vld [vmem:[%s0 + $0x38] sm:$0xff]
    %v79 = vld [vmem:[%s1] sm:$0xff]
    %v80 = vld [vmem:[%s1 + $0x8] sm:$0xff]
    %v81 = vld [vmem:[%s1 + $0x10] sm:$0xff]
    %v82 = vld [vmem:[%s1 + $0x18] sm:$0xff]
    %v83 = vld [vmem:[%s1 + $0x20] sm:$0xff]
    %v84 = vld [vmem:[%s1 + $0x28] sm:$0xff]
    %v85 = vld [vmem:[%s1 + $0x30] sm:$0xff]
    %v86 = vld [vmem:[%s1 + $0x38] sm:$0xff]
    %v87 = vld [vmem:[%s1 + $0x40] sm:$0xff]
    %v88 = vld [vmem:[%s1 + $0x48] sm:$0xff]
    %v89 = vld [vmem:[%s3] sm:$0x3]
    %v91 = vlaneseq
    %v92 = vshrl.u32 %v91, 7
    %v93 = vsub.s32 0, %v92
    %v94 = vrot.slane %v89, %v93
    %v95 = vlaneseq
    %v96 = vshrl.u32 %v95, 7
    %v97 = vsub.s32 1, %v96
    %v98 = vrot.slane %v89, %v97
    %vm101 = vcmask 326656
    %v103 = vsel %vm101, %v71, 0
    %v106 = vsel %vm101, %v72, 0
    %v109 = vsel %vm101, %v73, 0
    %v112 = vsel %vm101, %v74, 0
    %v115 = vsel %vm101, %v75, 0
    %v118 = vsel %vm101, %v76, 0
    %v121 = vsel %vm101, %v77, 0
    %v124 = vsel %vm101, %v78, 0
    %126 = vmatprep.subr.mxu0 %v80
    %127 = vmatpush1.msra.mxu0 %v79
    %128 = vmatprep.subr.mxu0 %v82
    %129 = vmatpush1.msra.mxu0 %v81
    %130 = vmatprep.subr.mxu0 %v84
    %131 = vmatpush1.msra.mxu0 %v83
    %132 = vmatprep.subr.mxu0 %v86
    %133 = vmatpush1.msra.mxu0 %v85
    %134 = vmatprep.subr.mxu0 %v88
    %135 = vmatpush1.msra.mxu0 %v87
    %136 = vmatprep.subr.mxu0 0.0
    %137 = vmatpush1.msra.mxu0 0.0
    %138 = vmatprep.subr.mxu0 0.0
    %139 = vmatpush1.msra.mxu0 0.0
    %140 = vmatprep.subr.mxu0 0.0
    %141 = vmatpush1.msra.mxu0 0.0
    %142 = vmatprep.subr.mxu0 0.0
    %143 = vmatpush1.msra.mxu0 0.0
    %144 = vmatprep.subr.mxu0 0.0
    %145 = vmatpush1.msra.mxu0 0.0
    %146 = vmatprep.subr.mxu0 0.0
    %147 = vmatpush1.msra.mxu0 0.0
    %148 = vmatprep.subr.mxu0 0.0
    %149 = vmatpush1.msra.mxu0 0.0
    %150 = vmatprep.subr.mxu0 0.0
    %151 = vmatpush1.msra.mxu0 0.0
    %152 = vmatprep.subr.mxu0 0.0
    %153 = vmatpush1.msra.mxu0 0.0
    %154 = vmatprep.subr.mxu0 0.0
    %155 = vmatpush1.msra.mxu0 0.0
    %156 = vmatprep.subr.mxu0 0.0
    %157 = vmatpush1.msra.mxu0 0.0
    %158 = vmatprep.subr.mxu0 0.0
    %159 = vmatpush1.msra.mxu0 0.0
    %160 = vmatprep.subr.mxu0 0.0
    %161 = vmatpush1.msra.mxu0 0.0
    %162 = vmatprep.subr.mxu0 0.0
    %163 = vmatpush1.msra.mxu0 0.0
    %164 = vmatprep.subr.mxu0 0.0
    %165 = vmatpush1.msra.mxu0 0.0
    %166 = vmatprep.subr.mxu0 0.0
    %167 = vmatpush1.msra.mxu0 0.0
    %168 = vmatprep.subr.mxu0 0.0
    %169 = vmatpush1.msra.mxu0 0.0
    %170 = vmatprep.subr.mxu0 0.0
    %171 = vmatpush1.msra.mxu0 0.0
    %172 = vmatprep.subr.mxu0 0.0
    %173 = vmatpush1.msra.mxu0 0.0
    %174 = vmatprep.subr.mxu0 0.0
    %175 = vmatpush1.msra.mxu0 0.0
    %176 = vmatprep.subr.mxu0 0.0
    %177 = vmatpush1.msra.mxu0 0.0
    %178 = vmatprep.subr.mxu0 0.0
    %179 = vmatpush1.msra.mxu0 0.0
    %180 = vmatprep.subr.mxu0 0.0
    %181 = vmatpush1.msra.mxu0 0.0
    %182 = vmatprep.subr.mxu0 0.0
    %183 = vmatpush1.msra.mxu0 0.0
    %184 = vmatprep.subr.mxu0 0.0
    %185 = vmatpush1.msra.mxu0 0.0
    %186 = vmatprep.subr.mxu0 0.0
    %187 = vmatpush1.msra.mxu0 0.0
    %188 = vmatprep.subr.mxu0 0.0
    %189 = vmatpush1.msra.mxu0 0.0
    %190 = vmatprep.mubr.f32.mxu0 0.0
    %191 = vmatmul.mubr.f32.gmra.mrb[0].mxu0 %v103
    %v192 = vpop.f32.mrb[0].mxu0
    %v193 = vadd.f32 %v94, %v192
    %v194 = vpop.f32.mrb[0].mxu0
    %v195 = vadd.f32 %v98, %v194
    %196 = vmatprep.mubr.f32.mxu0 0.0
    %197 = vmatmul.mubr.f32.gmra.mrb[0].mxu0 %v106
    %v198 = vpop.f32.mrb[0].mxu0
    %v199 = vadd.f32 %v94, %v198
    %v200 = vpop.f32.mrb[0].mxu0
    %v201 = vadd.f32 %v98, %v200
    %202 = vmatprep.mubr.f32.mxu0 0.0
    %203 = vmatmul.mubr.f32.gmra.mrb[0].mxu0 %v109
    %v204 = vpop.f32.mrb[0].mxu0
    %v205 = vadd.f32 %v94, %v204
    %v206 = vpop.f32.mrb[0].mxu0
    %v207 = vadd.f32 %v98, %v206
    %208 = vmatprep.mubr.f32.mxu0 0.0
    %209 = vmatmul.mubr.f32.gmra.mrb[0].mxu0 %v112
    %v210 = vpop.f32.mrb[0].mxu0
    %v211 = vadd.f32 %v94, %v210
    %v212 = vpop.f32.mrb[0].mxu0
    %v213 = vadd.f32 %v98, %v212
    %214 = vmatprep.mubr.f32.mxu0 0.0
    %215 = vmatmul.mubr.f32.gmra.mrb[0].mxu0 %v115
    %v216 = vpop.f32.mrb[0].mxu0
    %v217 = vadd.f32 %v94, %v216
    %v218 = vpop.f32.mrb[0].mxu0
    %v219 = vadd.f32 %v98, %v218
    %220 = vmatprep.mubr.f32.mxu0 0.0
    %221 = vmatmul.mubr.f32.gmra.mrb[0].mxu0 %v118
    %v222 = vpop.f32.mrb[0].mxu0
    %v223 = vadd.f32 %v94, %v222
    %v224 = vpop.f32.mrb[0].mxu0
    %v225 = vadd.f32 %v98, %v224
    %226 = vmatprep.mubr.f32.mxu0 0.0
    %227 = vmatmul.mubr.f32.gmra.mrb[0].mxu0 %v121
    %v228 = vpop.f32.mrb[0].mxu0
    %v229 = vadd.f32 %v94, %v228
    %v230 = vpop.f32.mrb[0].mxu0
    %v231 = vadd.f32 %v98, %v230
    %232 = vmatprep.mubr.f32.mxu0 0.0
    %233 = vmatmul.mubr.f32.gmra.mrb[0].mxu0 %v124
    %v234 = vpop.f32.mrb[0].mxu0
    %v235 = vadd.f32 %v94, %v234
    %v236 = vpop.f32.mrb[0].mxu0
    %v237 = vadd.f32 %v98, %v236
    %238 = vdwg.mxu0
    %v239 = vld [vmem:[#allocation2] sm:$0xff]
    %v240 = vld [vmem:[#allocation2 + $0x8] sm:$0xff]
    %v241 = vld [vmem:[#allocation2 + $0x10] sm:$0xff]
    %v242 = vld [vmem:[#allocation2 + $0x18] sm:$0xff]
    %v243 = vld [vmem:[#allocation2 + $0x20] sm:$0xff]
    %v244 = vld [vmem:[#allocation2 + $0x28] sm:$0xff]
    %v245 = vld [vmem:[#allocation2 + $0x30] sm:$0xff]
    %v246 = vld [vmem:[#allocation2 + $0x38] sm:$0xff]
    %v247 = vld [vmem:[#allocation2 + $0x40] sm:$0xff]
    %v248 = vld [vmem:[#allocation2 + $0x48] sm:$0xff]
    %v249 = vld [vmem:[#allocation2 + $0x50] sm:$0xff]
    %v250 = vld [vmem:[#allocation2 + $0x58] sm:$0xff]
    %v251 = vld [vmem:[#allocation2 + $0x60] sm:$0xff]
    %v252 = vld [vmem:[#allocation2 + $0x68] sm:$0xff]
    %v253 = vld [vmem:[#allocation2 + $0x70] sm:$0xff]
    %v254 = vld [vmem:[#allocation2 + $0x78] sm:$0xff]
    %v255 = vlaneseq
    %v256 = vand.u32 %v255, 127
    %v257 = vadd.s32 %v256, 128
    %vm258 = vcmp.ge.s32.totalorder %v256, 128
    %vm259 = vcmp.ge.s32.totalorder %v257, 128
    %vm260 = vcmp.lt.s32.totalorder %v256, 192
    %vm261 = vcmp.lt.s32.totalorder %v257, 192
    %vm262 = vmand %vm258, %vm260
    %vm263 = vmand %vm259, %vm261
    %vm264 = vcmask 523264
    %v266 = vsel %vm264, 0.0, 0
    %268 = vmatprep.subr.mxu0 %v240
    %269 = vmatpush1.msra.mxu0 %v239
    %270 = vmatprep.subr.mxu0 %v242
    %271 = vmatpush1.msra.mxu0 %v241
    %272 = vmatprep.subr.mxu0 %v244
    %273 = vmatpush1.msra.mxu0 %v243
    %274 = vmatprep.subr.mxu0 %v246
    %275 = vmatpush1.msra.mxu0 %v245
    %276 = vmatprep.subr.mxu0 %v248
    %277 = vmatpush1.msra.mxu0 %v247
    %278 = vmatprep.subr.mxu0 %v250
    %279 = vmatpush1.msra.mxu0 %v249
    %280 = vmatprep.subr.mxu0 %v252
    %281 = vmatpush1.msra.mxu0 %v251
    %282 = vmatprep.subr.mxu0 %v254
    %283 = vmatpush1.msra.mxu0 %v253
    %284 = vmatprep.subr.mxu0 0.0
    %285 = vmatpush1.msra.mxu0 0.0
    %286 = vmatprep.subr.mxu0 0.0
    %287 = vmatpush1.msra.mxu0 0.0
    %288 = vmatprep.subr.mxu0 0.0
    %289 = vmatpush1.msra.mxu0 0.0
    %290 = vmatprep.subr.mxu0 0.0
    %291 = vmatpush1.msra.mxu0 0.0
    %292 = vmatprep.subr.mxu0 0.0
    %293 = vmatpush1.msra.mxu0 0.0
    %294 = vmatprep.subr.mxu0 0.0
    %295 = vmatpush1.msra.mxu0 0.0
    %296 = vmatprep.subr.mxu0 0.0
    %297 = vmatpush1.msra.mxu0 0.0
    %298 = vmatprep.subr.mxu0 0.0
    %299 = vmatpush1.msra.mxu0 0.0
    %300 = vmatprep.subr.mxu0 0.0
    %301 = vmatpush1.msra.mxu0 0.0
    %302 = vmatprep.subr.mxu0 0.0
    %303 = vmatpush1.msra.mxu0 0.0
    %304 = vmatprep.subr.mxu0 0.0
    %305 = vmatpush1.msra.mxu0 0.0
    %306 = vmatprep.subr.mxu0 0.0
    %307 = vmatpush1.msra.mxu0 0.0
    %308 = vmatprep.subr.mxu0 0.0
    %309 = vmatpush1.msra.mxu0 0.0
    %310 = vmatprep.subr.mxu0 0.0
    %311 = vmatpush1.msra.mxu0 0.0
    %312 = vmatprep.subr.mxu0 0.0
    %313 = vmatpush1.msra.mxu0 0.0
    %314 = vmatprep.subr.mxu0 0.0
    %315 = vmatpush1.msra.mxu0 0.0
    %316 = vmatprep.subr.mxu0 0.0
    %317 = vmatpush1.msra.mxu0 0.0
    %318 = vmatprep.subr.mxu0 0.0
    %319 = vmatpush1.msra.mxu0 0.0
    %320 = vmatprep.subr.mxu0 0.0
    %321 = vmatpush1.msra.mxu0 0.0
    %322 = vmatprep.subr.mxu0 0.0
    %323 = vmatpush1.msra.mxu0 0.0
    %324 = vmatprep.subr.mxu0 0.0
    %325 = vmatpush1.msra.mxu0 0.0
    %326 = vmatprep.subr.mxu0 0.0
    %327 = vmatpush1.msra.mxu0 0.0
    %328 = vmatprep.subr.mxu0 0.0
    %329 = vmatpush1.msra.mxu0 0.0
    %330 = vmatprep.subr.mxu0 0.0
    %331 = vmatpush1.msra.mxu0 0.0
    %332 = vmatprep.mubr.f32.mxu0 0.0
    %333 = vmatmul.mubr.f32.gmra.mrb[0].mxu0 %v266
    %v334 = vpop.f32.mrb[0].mxu0
    %v335 = vadd.f32 0.0, %v334
    %v336 = vpop.f32.mrb[0].mxu0
    %v337 = vadd.f32 0.0, %v336
    %338 = vdwg.mxu0
    %v339 = vadd.f32 %v193, %v335
    %v340 = vadd.f32 %v195, %v337
    %v341 = vtanh.pop %v339
    %v342 = vtanh.pop %v340
    %v343 = vxor.u32 %v339, 2147483648
    %v344 = vxor.u32 %v340, 2147483648
    %v345 = vmul.f32 %v343, 1.442695
    %v346 = vpow.pop %v345
    %v347 = vmul.f32 %v344, 1.442695
    %v348 = vpow.pop %v347
    %v349 = vadd.f32 %v346, 1.0
    %v350 = vadd.f32 %v348, 1.0
    %v351 = vrcp.pop %v349
    %v352 = vmul.f32 1.0, %v351
    %v353 = vrcp.pop %v350
    %v354 = vmul.f32 1.0, %v353
    %v355 = vsel %vm262, %v341, %v352
    %v356 = vsel %vm263, %v342, %v354
    %v357 = vmul.f32 %v355, 0.0
    %v358 = vmul.f32 %v355, %v356
    %360 = vrot.lane.b32.xlu0 %v358, 64
    %v361 = vpop.permute.xlu0 %360
    %v363 = vadd.f32 %v357, %v361
    %v364 = vtanh.pop %v363
    %v365 = vmul.f32 %v356, %v364
    %367 = vrot.lane.b32.xlu0 %v365, 64
    %v368 = vpop.permute.xlu0 %367
    %v369 = vsel %vm264, %v368, 0
    %371 = vmatprep.subr.mxu0 %v240
    %372 = vmatpush1.msra.mxu0 %v239
    %373 = vmatprep.subr.mxu0 %v242
    %374 = vmatpush1.msra.mxu0 %v241
    %375 = vmatprep.subr.mxu0 %v244
    %376 = vmatpush1.msra.mxu0 %v243
    %377 = vmatprep.subr.mxu0 %v246
    %378 = vmatpush1.msra.mxu0 %v245
    %379 = vmatprep.subr.mxu0 %v248
    %380 = vmatpush1.msra.mxu0 %v247
    %381 = vmatprep.subr.mxu0 %v250
    %382 = vmatpush1.msra.mxu0 %v249
    %383 = vmatprep.subr.mxu0 %v252
    %384 = vmatpush1.msra.mxu0 %v251
    %385 = vmatprep.subr.mxu0 %v254
    %386 = vmatpush1.msra.mxu0 %v253
    %387 = vmatprep.subr.mxu0 0.0
    %388 = vmatpush1.msra.mxu0 0.0
    %389 = vmatprep.subr.mxu0 0.0
    %390 = vmatpush1.msra.mxu0 0.0
    %391 = vmatprep.subr.mxu0 0.0
    %392 = vmatpush1.msra.mxu0 0.0
    %393 = vmatprep.subr.mxu0 0.0
    %394 = vmatpush1.msra.mxu0 0.0
    %395 = vmatprep.subr.mxu0 0.0
    %396 = vmatpush1.msra.mxu0 0.0
    %397 = vmatprep.subr.mxu0 0.0
    %398 = vmatpush1.msra.mxu0 0.0
    %399 = vmatprep.subr.mxu0 0.0
    %400 = vmatpush1.msra.mxu0 0.0
    %401 = vmatprep.subr.mxu0 0.0
    %402 = vmatpush1.msra.mxu0 0.0
    %403 = vmatprep.subr.mxu0 0.0
    %404 = vmatpush1.msra.mxu0 0.0
    %405 = vmatprep.subr.mxu0 0.0
    %406 = vmatpush1.msra.mxu0 0.0
    %407 = vmatprep.subr.mxu0 0.0
    %408 = vmatpush1.msra.mxu0 0.0
    %409 = vmatprep.subr.mxu0 0.0
    %410 = vmatpush1.msra.mxu0 0.0
    %411 = vmatprep.subr.mxu0 0.0
    %412 = vmatpush1.msra.mxu0 0.0
    %413 = vmatprep.subr.mxu0 0.0
    %414 = vmatpush1.msra.mxu0 0.0
    %415 = vmatprep.subr.mxu0 0.0
    %416 = vmatpush1.msra.mxu0 0.0
    %417 = vmatprep.subr.mxu0 0.0
    %418 = vmatpush1.msra.mxu0 0.0
    %419 = vmatprep.subr.mxu0 0.0
    %420 = vmatpush1.msra.mxu0 0.0
    %421 = vmatprep.subr.mxu0 0.0
    %422 = vmatpush1.msra.mxu0 0.0
    %423 = vmatprep.subr.mxu0 0.0
    %424 = vmatpush1.msra.mxu0 0.0
    %425 = vmatprep.subr.mxu0 0.0
    %426 = vmatpush1.msra.mxu0 0.0
    %427 = vmatprep.subr.mxu0 0.0
    %428 = vmatpush1.msra.mxu0 0.0
    %429 = vmatprep.subr.mxu0 0.0
    %430 = vmatpush1.msra.mxu0 0.0
    %431 = vmatprep.subr.mxu0 0.0
    %432 = vmatpush1.msra.mxu0 0.0
    %433 = vmatprep.subr.mxu0 0.0
    %434 = vmatpush1.msra.mxu0 0.0
    %435 = vmatprep.mubr.f32.mxu0 0.0
    %436 = vmatmul.mubr.f32.gmra.mrb[0].mxu0 %v369
    %v437 = vpop.f32.mrb[0].mxu0
    %v438 = vadd.f32 0.0, %v437
    %v439 = vpop.f32.mrb[0].mxu0
    %v440 = vadd.f32 0.0, %v439
    %441 = vdwg.mxu0
    %v442 = vadd.f32 %v199, %v438
    %v443 = vadd.f32 %v201, %v440
    %v444 = vtanh.pop %v442
    %v445 = vtanh.pop %v443
    %v446 = vxor.u32 %v442, 2147483648
    %v447 = vxor.u32 %v443, 2147483648
    %v448 = vmul.f32 %v446, 1.442695
    %v449 = vpow.pop %v448
    %v450 = vmul.f32 %v447, 1.442695
    %v451 = vpow.pop %v450
    %v452 = vadd.f32 %v449, 1.0
    %v453 = vadd.f32 %v451, 1.0
    %v454 = vrcp.pop %v452
    %v455 = vmul.f32 1.0, %v454
    %v456 = vrcp.pop %v453
    %v457 = vmul.f32 1.0, %v456
    %v458 = vsel %vm262, %v444, %v455
    %v459 = vsel %vm263, %v445, %v457
    %v460 = vmul.f32 %v458, %v363
    %v461 = vmul.f32 %v458, %v459
    %463 = vrot.lane.b32.xlu0 %v461, 64
    %v464 = vpop.permute.xlu0 %463
    %v466 = vadd.f32 %v460, %v464
    %v467 = vtanh.pop %v466
    %v468 = vmul.f32 %v459, %v467
    %470 = vrot.lane.b32.xlu0 %v468, 64
    %v471 = vpop.permute.xlu0 %470
    %v472 = vsel %vm264, %v471, 0
    %474 = vmatprep.subr.mxu0 %v240
    %475 = vmatpush1.msra.mxu0 %v239
    %476 = vmatprep.subr.mxu0 %v242
    %477 = vmatpush1.msra.mxu0 %v241
    %478 = vmatprep.subr.mxu0 %v244
    %479 = vmatpush1.msra.mxu0 %v243
    %480 = vmatprep.subr.mxu0 %v246
    %481 = vmatpush1.msra.mxu0 %v245
    %482 = vmatprep.subr.mxu0 %v248
    %483 = vmatpush1.msra.mxu0 %v247
    %484 = vmatprep.subr.mxu0 %v250
    %485 = vmatpush1.msra.mxu0 %v249
    %486 = vmatprep.subr.mxu0 %v252
    %487 = vmatpush1.msra.mxu0 %v251
    %488 = vmatprep.subr.mxu0 %v254
    %489 = vmatpush1.msra.mxu0 %v253
    %490 = vmatprep.subr.mxu0 0.0
    %491 = vmatpush1.msra.mxu0 0.0
    %492 = vmatprep.subr.mxu0 0.0
    %493 = vmatpush1.msra.mxu0 0.0
    %494 = vmatprep.subr.mxu0 0.0
    %495 = vmatpush1.msra.mxu0 0.0
    %496 = vmatprep.subr.mxu0 0.0
    %497 = vmatpush1.msra.mxu0 0.0
    %498 = vmatprep.subr.mxu0 0.0
    %499 = vmatpush1.msra.mxu0 0.0
    %500 = vmatprep.subr.mxu0 0.0
    %501 = vmatpush1.msra.mxu0 0.0
    %502 = vmatprep.subr.mxu0 0.0
    %503 = vmatpush1.msra.mxu0 0.0
    %504 = vmatprep.subr.mxu0 0.0
    %505 = vmatpush1.msra.mxu0 0.0
    %506 = vmatprep.subr.mxu0 0.0
    %507 = vmatpush1.msra.mxu0 0.0
    %508 = vmatprep.subr.mxu0 0.0
    %509 = vmatpush1.msra.mxu0 0.0
    %510 = vmatprep.subr.mxu0 0.0
    %511 = vmatpush1.msra.mxu0 0.0
    %512 = vmatprep.subr.mxu0 0.0
    %513 = vmatpush1.msra.mxu0 0.0
    %514 = vmatprep.subr.mxu0 0.0
    %515 = vmatpush1.msra.mxu0 0.0
    %516 = vmatprep.subr.mxu0 0.0
    %517 = vmatpush1.msra.mxu0 0.0
    %518 = vmatprep.subr.mxu0 0.0
    %519 = vmatpush1.msra.mxu0 0.0
    %520 = vmatprep.subr.mxu0 0.0
    %521 = vmatpush1.msra.mxu0 0.0
    %522 = vmatprep.subr.mxu0 0.0
    %523 = vmatpush1.msra.mxu0 0.0
    %524 = vmatprep.subr.mxu0 0.0
    %525 = vmatpush1.msra.mxu0 0.0
    %526 = vmatprep.subr.mxu0 0.0
    %527 = vmatpush1.msra.mxu0 0.0
    %528 = vmatprep.subr.mxu0 0.0
    %529 = vmatpush1.msra.mxu0 0.0
    %530 = vmatprep.subr.mxu0 0.0
    %531 = vmatpush1.msra.mxu0 0.0
    %532 = vmatprep.subr.mxu0 0.0
    %533 = vmatpush1.msra.mxu0 0.0
    %534 = vmatprep.subr.mxu0 0.0
    %535 = vmatpush1.msra.mxu0 0.0
    %536 = vmatprep.subr.mxu0 0.0
    %537 = vmatpush1.msra.mxu0 0.0
    %538 = vmatprep.mubr.f32.mxu0 0.0
    %539 = vmatmul.mubr.f32.gmra.mrb[0].mxu0 %v472
    %v540 = vpop.f32.mrb[0].mxu0
    %v541 = vadd.f32 0.0, %v540
    %v542 = vpop.f32.mrb[0].mxu0
    %v543 = vadd.f32 0.0, %v542
    %544 = vdwg.mxu0
    %v545 = vadd.f32 %v205, %v541
    %v546 = vadd.f32 %v207, %v543
    %v547 = vtanh.pop %v545
    %v548 = vtanh.pop %v546
    %v549 = vxor.u32 %v545, 2147483648
    %v550 = vxor.u32 %v546, 2147483648
    %v551 = vmul.f32 %v549, 1.442695
    %v552 = vpow.pop %v551
    %v553 = vmul.f32 %v550, 1.442695
    %v554 = vpow.pop %v553
    %v555 = vadd.f32 %v552, 1.0
    %v556 = vadd.f32 %v554, 1.0
    %v557 = vrcp.pop %v555
    %v558 = vmul.f32 1.0, %v557
    %v559 = vrcp.pop %v556
    %v560 = vmul.f32 1.0, %v559
    %v561 = vsel %vm262, %v547, %v558
    %v562 = vsel %vm263, %v548, %v560
    %v563 = vmul.f32 %v561, %v466
    %v564 = vmul.f32 %v561, %v562
    %566 = vrot.lane.b32.xlu0 %v564, 64
    %v567 = vpop.permute.xlu0 %566
    %v569 = vadd.f32 %v563, %v567
    %v570 = vtanh.pop %v569
    %v571 = vmul.f32 %v562, %v570
    %573 = vrot.lane.b32.xlu0 %v571, 64
    %v574 = vpop.permute.xlu0 %573
    %v575 = vsel %vm264, %v574, 0
    %577 = vmatprep.subr.mxu0 %v240
    %578 = vmatpush1.msra.mxu0 %v239
    %579 = vmatprep.subr.mxu0 %v242
    %580 = vmatpush1.msra.mxu0 %v241
    %581 = vmatprep.subr.mxu0 %v244
    %582 = vmatpush1.msra.mxu0 %v243
    %583 = vmatprep.subr.mxu0 %v246
    %584 = vmatpush1.msra.mxu0 %v245
    %585 = vmatprep.subr.mxu0 %v248
    %586 = vmatpush1.msra.mxu0 %v247
    %587 = vmatprep.subr.mxu0 %v250
    %588 = vmatpush1.msra.mxu0 %v249
    %589 = vmatprep.subr.mxu0 %v252
    %590 = vmatpush1.msra.mxu0 %v251
    %591 = vmatprep.subr.mxu0 %v254
    %592 = vmatpush1.msra.mxu0 %v253
    %593 = vmatprep.subr.mxu0 0.0
    %594 = vmatpush1.msra.mxu0 0.0
    %595 = vmatprep.subr.mxu0 0.0
    %596 = vmatpush1.msra.mxu0 0.0
    %597 = vmatprep.subr.mxu0 0.0
    %598 = vmatpush1.msra.mxu0 0.0
    %599 = vmatprep.subr.mxu0 0.0
    %600 = vmatpush1.msra.mxu0 0.0
    %601 = vmatprep.subr.mxu0 0.0
    %602 = vmatpush1.msra.mxu0 0.0
    %603 = vmatprep.subr.mxu0 0.0
    %604 = vmatpush1.msra.mxu0 0.0
    %605 = vmatprep.subr.mxu0 0.0
    %606 = vmatpush1.msra.mxu0 0.0
    %607 = vmatprep.subr.mxu0 0.0
    %608 = vmatpush1.msra.mxu0 0.0
    %609 = vmatprep.subr.mxu0 0.0
    %610 = vmatpush1.msra.mxu0 0.0
    %611 = vmatprep.subr.mxu0 0.0
    %612 = vmatpush1.msra.mxu0 0.0
    %613 = vmatprep.subr.mxu0 0.0
    %614 = vmatpush1.msra.mxu0 0.0
    %615 = vmatprep.subr.mxu0 0.0
    %616 = vmatpush1.msra.mxu0 0.0
    %617 = vmatprep.subr.mxu0 0.0
    %618 = vmatpush1.msra.mxu0 0.0
    %619 = vmatprep.subr.mxu0 0.0
    %620 = vmatpush1.msra.mxu0 0.0
    %621 = vmatprep.subr.mxu0 0.0
    %622 = vmatpush1.msra.mxu0 0.0
    %623 = vmatprep.subr.mxu0 0.0
    %624 = vmatpush1.msra.mxu0 0.0
    %625 = vmatprep.subr.mxu0 0.0
    %626 = vmatpush1.msra.mxu0 0.0
    %627 = vmatprep.subr.mxu0 0.0
    %628 = vmatpush1.msra.mxu0 0.0
    %629 = vmatprep.subr.mxu0 0.0
    %630 = vmatpush1.msra.mxu0 0.0
    %631 = vmatprep.subr.mxu0 0.0
    %632 = vmatpush1.msra.mxu0 0.0
    %633 = vmatprep.subr.mxu0 0.0
    %634 = vmatpush1.msra.mxu0 0.0
    %635 = vmatprep.subr.mxu0 0.0
    %636 = vmatpush1.msra.mxu0 0.0
    %637 = vmatprep.subr.mxu0 0.0
    %638 = vmatpush1.msra.mxu0 0.0
    %639 = vmatprep.subr.mxu0 0.0
    %640 = vmatpush1.msra.mxu0 0.0
    %641 = vmatprep.mubr.f32.mxu0 0.0
    %642 = vmatmul.mubr.f32.gmra.mrb[0].mxu0 %v575
    %v643 = vpop.f32.mrb[0].mxu0
    %v644 = vadd.f32 0.0, %v643
    %v645 = vpop.f32.mrb[0].mxu0
    %v646 = vadd.f32 0.0, %v645
    %647 = vdwg.mxu0
    %v648 = vadd.f32 %v211, %v644
    %v649 = vadd.f32 %v213, %v646
    %v650 = vtanh.pop %v648
    %v651 = vtanh.pop %v649
    %v652 = vxor.u32 %v648, 2147483648
    %v653 = vxor.u32 %v649, 2147483648
    %v654 = vmul.f32 %v652, 1.442695
    %v655 = vpow.pop %v654
    %v656 = vmul.f32 %v653, 1.442695
    %v657 = vpow.pop %v656
    %v658 = vadd.f32 %v655, 1.0
    %v659 = vadd.f32 %v657, 1.0
    %v660 = vrcp.pop %v658
    %v661 = vmul.f32 1.0, %v660
    %v662 = vrcp.pop %v659
    %v663 = vmul.f32 1.0, %v662
    %v664 = vsel %vm262, %v650, %v661
    %v665 = vsel %vm263, %v651, %v663
    %v666 = vmul.f32 %v664, %v569
    %v667 = vmul.f32 %v664, %v665
    %669 = vrot.lane.b32.xlu0 %v667, 64
    %v670 = vpop.permute.xlu0 %669
    %v672 = vadd.f32 %v666, %v670
    %v673 = vtanh.pop %v672
    %v674 = vmul.f32 %v665, %v673
    %676 = vrot.lane.b32.xlu0 %v674, 64
    %v677 = vpop.permute.xlu0 %676
    %v678 = vsel %vm264, %v677, 0
    %680 = vmatprep.subr.mxu0 %v240
    %681 = vmatpush1.msra.mxu0 %v239
    %682 = vmatprep.subr.mxu0 %v242
    %683 = vmatpush1.msra.mxu0 %v241
    %684 = vmatprep.subr.mxu0 %v244
    %685 = vmatpush1.msra.mxu0 %v243
    %686 = vmatprep.subr.mxu0 %v246
    %687 = vmatpush1.msra.mxu0 %v245
    %688 = vmatprep.subr.mxu0 %v248
    %689 = vmatpush1.msra.mxu0 %v247
    %690 = vmatprep.subr.mxu0 %v250
    %691 = vmatpush1.msra.mxu0 %v249
    %692 = vmatprep.subr.mxu0 %v252
    %693 = vmatpush1.msra.mxu0 %v251
    %694 = vmatprep.subr.mxu0 %v254
    %695 = vmatpush1.msra.mxu0 %v253
    %696 = vmatprep.subr.mxu0 0.0
    %697 = vmatpush1.msra.mxu0 0.0
    %698 = vmatprep.subr.mxu0 0.0
    %699 = vmatpush1.msra.mxu0 0.0
    %700 = vmatprep.subr.mxu0 0.0
    %701 = vmatpush1.msra.mxu0 0.0
    %702 = vmatprep.subr.mxu0 0.0
    %703 = vmatpush1.msra.mxu0 0.0
    %704 = vmatprep.subr.mxu0 0.0
    %705 = vmatpush1.msra.mxu0 0.0
    %706 = vmatprep.subr.mxu0 0.0
    %707 = vmatpush1.msra.mxu0 0.0
    %708 = vmatprep.subr.mxu0 0.0
    %709 = vmatpush1.msra.mxu0 0.0
    %710 = vmatprep.subr.mxu0 0.0
    %711 = vmatpush1.msra.mxu0 0.0
    %712 = vmatprep.subr.mxu0 0.0
    %713 = vmatpush1.msra.mxu0 0.0
    %714 = vmatprep.subr.mxu0 0.0
    %715 = vmatpush1.msra.mxu0 0.0
    %716 = vmatprep.subr.mxu0 0.0
    %717 = vmatpush1.msra.mxu0 0.0
    %718 = vmatprep.subr.mxu0 0.0
    %719 = vmatpush1.msra.mxu0 0.0
    %720 = vmatprep.subr.mxu0 0.0
    %721 = vmatpush1.msra.mxu0 0.0
    %722 = vmatprep.subr.mxu0 0.0
    %723 = vmatpush1.msra.mxu0 0.0
    %724 = vmatprep.subr.mxu0 0.0
    %725 = vmatpush1.msra.mxu0 0.0
    %726 = vmatprep.subr.mxu0 0.0
    %727 = vmatpush1.msra.mxu0 0.0
    %728 = vmatprep.subr.mxu0 0.0
    %729 = vmatpush1.msra.mxu0 0.0
    %730 = vmatprep.subr.mxu0 0.0
    %731 = vmatpush1.msra.mxu0 0.0
    %732 = vmatprep.subr.mxu0 0.0
    %733 = vmatpush1.msra.mxu0 0.0
    %734 = vmatprep.subr.mxu0 0.0
    %735 = vmatpush1.msra.mxu0 0.0
    %736 = vmatprep.subr.mxu0 0.0
    %737 = vmatpush1.msra.mxu0 0.0
    %738 = vmatprep.subr.mxu0 0.0
    %739 = vmatpush1.msra.mxu0 0.0
    %740 = vmatprep.subr.mxu0 0.0
    %741 = vmatpush1.msra.mxu0 0.0
    %742 = vmatprep.subr.mxu0 0.0
    %743 = vmatpush1.msra.mxu0 0.0
    %744 = vmatprep.mubr.f32.mxu0 0.0
    %745 = vmatmul.mubr.f32.gmra.mrb[0].mxu0 %v678
    %v746 = vpop.f32.mrb[0].mxu0
    %v747 = vadd.f32 0.0, %v746
    %v748 = vpop.f32.mrb[0].mxu0
    %v749 = vadd.f32 0.0, %v748
    %750 = vdwg.mxu0
    %v751 = vadd.f32 %v217, %v747
    %v752 = vadd.f32 %v219, %v749
    %v753 = vtanh.pop %v751
    %v754 = vtanh.pop %v752
    %v755 = vxor.u32 %v751, 2147483648
    %v756 = vxor.u32 %v752, 2147483648
    %v757 = vmul.f32 %v755, 1.442695
    %v758 = vpow.pop %v757
    %v759 = vmul.f32 %v756, 1.442695
    %v760 = vpow.pop %v759
    %v761 = vadd.f32 %v758, 1.0
    %v762 = vadd.f32 %v760, 1.0
    %v763 = vrcp.pop %v761
    %v764 = vmul.f32 1.0, %v763
    %v765 = vrcp.pop %v762
    %v766 = vmul.f32 1.0, %v765
    %v767 = vsel %vm262, %v753, %v764
    %v768 = vsel %vm263, %v754, %v766
    %v769 = vmul.f32 %v767, %v672
    %v770 = vmul.f32 %v767, %v768
    %772 = vrot.lane.b32.xlu0 %v770, 64
    %v773 = vpop.permute.xlu0 %772
    %v775 = vadd.f32 %v769, %v773
    %v776 = vtanh.pop %v775
    %v777 = vmul.f32 %v768, %v776
    %779 = vrot.lane.b32.xlu0 %v777, 64
    %v780 = vpop.permute.xlu0 %779
    %v781 = vsel %vm264, %v780, 0
    %783 = vmatprep.subr.mxu0 %v240
    %784 = vmatpush1.msra.mxu0 %v239
    %785 = vmatprep.subr.mxu0 %v242
    %786 = vmatpush1.msra.mxu0 %v241
    %787 = vmatprep.subr.mxu0 %v244
    %788 = vmatpush1.msra.mxu0 %v243
    %789 = vmatprep.subr.mxu0 %v246
    %790 = vmatpush1.msra.mxu0 %v245
    %791 = vmatprep.subr.mxu0 %v248
    %792 = vmatpush1.msra.mxu0 %v247
    %793 = vmatprep.subr.mxu0 %v250
    %794 = vmatpush1.msra.mxu0 %v249
    %795 = vmatprep.subr.mxu0 %v252
    %796 = vmatpush1.msra.mxu0 %v251
    %797 = vmatprep.subr.mxu0 %v254
    %798 = vmatpush1.msra.mxu0 %v253
    %799 = vmatprep.subr.mxu0 0.0
    %800 = vmatpush1.msra.mxu0 0.0
    %801 = vmatprep.subr.mxu0 0.0
    %802 = vmatpush1.msra.mxu0 0.0
    %803 = vmatprep.subr.mxu0 0.0
    %804 = vmatpush1.msra.mxu0 0.0
    %805 = vmatprep.subr.mxu0 0.0
    %806 = vmatpush1.msra.mxu0 0.0
    %807 = vmatprep.subr.mxu0 0.0
    %808 = vmatpush1.msra.mxu0 0.0
    %809 = vmatprep.subr.mxu0 0.0
    %810 = vmatpush1.msra.mxu0 0.0
    %811 = vmatprep.subr.mxu0 0.0
    %812 = vmatpush1.msra.mxu0 0.0
    %813 = vmatprep.subr.mxu0 0.0
    %814 = vmatpush1.msra.mxu0 0.0
    %815 = vmatprep.subr.mxu0 0.0
    %816 = vmatpush1.msra.mxu0 0.0
    %817 = vmatprep.subr.mxu0 0.0
    %818 = vmatpush1.msra.mxu0 0.0
    %819 = vmatprep.subr.mxu0 0.0
    %820 = vmatpush1.msra.mxu0 0.0
    %821 = vmatprep.subr.mxu0 0.0
    %822 = vmatpush1.msra.mxu0 0.0
    %823 = vmatprep.subr.mxu0 0.0
    %824 = vmatpush1.msra.mxu0 0.0
    %825 = vmatprep.subr.mxu0 0.0
    %826 = vmatpush1.msra.mxu0 0.0
    %827 = vmatprep.subr.mxu0 0.0
    %828 = vmatpush1.msra.mxu0 0.0
    %829 = vmatprep.subr.mxu0 0.0
    %830 = vmatpush1.msra.mxu0 0.0
    %831 = vmatprep.subr.mxu0 0.0
    %832 = vmatpush1.msra.mxu0 0.0
    %833 = vmatprep.subr.mxu0 0.0
    %834 = vmatpush1.msra.mxu0 0.0
    %835 = vmatprep.subr.mxu0 0.0
    %836 = vmatpush1.msra.mxu0 0.0
    %837 = vmatprep.subr.mxu0 0.0
    %838 = vmatpush1.msra.mxu0 0.0
    %839 = vmatprep.subr.mxu0 0.0
    %840 = vmatpush1.msra.mxu0 0.0
    %841 = vmatprep.subr.mxu0 0.0
    %842 = vmatpush1.msra.mxu0 0.0
    %843 = vmatprep.subr.mxu0 0.0
    %844 = vmatpush1.msra.mxu0 0.0
    %845 = vmatprep.subr.mxu0 0.0
    %846 = vmatpush1.msra.mxu0 0.0
    %847 = vmatprep.mubr.f32.mxu0 0.0
    %848 = vmatmul.mubr.f32.gmra.mrb[0].mxu0 %v781
    %v849 = vpop.f32.mrb[0].mxu0
    %v850 = vadd.f32 0.0, %v849
    %v851 = vpop.f32.mrb[0].mxu0
    %v852 = vadd.f32 0.0, %v851
    %853 = vdwg.mxu0
    %v854 = vadd.f32 %v223, %v850
    %v855 = vadd.f32 %v225, %v852
    %v856 = vtanh.pop %v854
    %v857 = vtanh.pop %v855
    %v858 = vxor.u32 %v854, 2147483648
    %v859 = vxor.u32 %v855, 2147483648
    %v860 = vmul.f32 %v858, 1.442695
    %v861 = vpow.pop %v860
    %v862 = vmul.f32 %v859, 1.442695
    %v863 = vpow.pop %v862
    %v864 = vadd.f32 %v861, 1.0
    %v865 = vadd.f32 %v863, 1.0
    %v866 = vrcp.pop %v864
    %v867 = vmul.f32 1.0, %v866
    %v868 = vrcp.pop %v865
    %v869 = vmul.f32 1.0, %v868
    %v870 = vsel %vm262, %v856, %v867
    %v871 = vsel %vm263, %v857, %v869
    %v872 = vmul.f32 %v870, %v775
    %v873 = vmul.f32 %v870, %v871
    %875 = vrot.lane.b32.xlu0 %v873, 64
    %v876 = vpop.permute.xlu0 %875
    %v878 = vadd.f32 %v872, %v876
    %v879 = vtanh.pop %v878
    %v880 = vmul.f32 %v871, %v879
    %882 = vrot.lane.b32.xlu0 %v880, 64
    %v883 = vpop.permute.xlu0 %882
    %v884 = vsel %vm264, %v883, 0
    %886 = vmatprep.subr.mxu0 %v240
    %887 = vmatpush1.msra.mxu0 %v239
    %888 = vmatprep.subr.mxu0 %v242
    %889 = vmatpush1.msra.mxu0 %v241
    %890 = vmatprep.subr.mxu0 %v244
    %891 = vmatpush1.msra.mxu0 %v243
    %892 = vmatprep.subr.mxu0 %v246
    %893 = vmatpush1.msra.mxu0 %v245
    %894 = vmatprep.subr.mxu0 %v248
    %895 = vmatpush1.msra.mxu0 %v247
    %896 = vmatprep.subr.mxu0 %v250
    %897 = vmatpush1.msra.mxu0 %v249
    %898 = vmatprep.subr.mxu0 %v252
    %899 = vmatpush1.msra.mxu0 %v251
    %900 = vmatprep.subr.mxu0 %v254
    %901 = vmatpush1.msra.mxu0 %v253
    %902 = vmatprep.subr.mxu0 0.0
    %903 = vmatpush1.msra.mxu0 0.0
    %904 = vmatprep.subr.mxu0 0.0
    %905 = vmatpush1.msra.mxu0 0.0
    %906 = vmatprep.subr.mxu0 0.0
    %907 = vmatpush1.msra.mxu0 0.0
    %908 = vmatprep.subr.mxu0 0.0
    %909 = vmatpush1.msra.mxu0 0.0
    %910 = vmatprep.subr.mxu0 0.0
    %911 = vmatpush1.msra.mxu0 0.0
    %912 = vmatprep.subr.mxu0 0.0
    %913 = vmatpush1.msra.mxu0 0.0
    %914 = vmatprep.subr.mxu0 0.0
    %915 = vmatpush1.msra.mxu0 0.0
    %916 = vmatprep.subr.mxu0 0.0
    %917 = vmatpush1.msra.mxu0 0.0
    %918 = vmatprep.subr.mxu0 0.0
    %919 = vmatpush1.msra.mxu0 0.0
    %920 = vmatprep.subr.mxu0 0.0
    %921 = vmatpush1.msra.mxu0 0.0
    %922 = vmatprep.subr.mxu0 0.0
    %923 = vmatpush1.msra.mxu0 0.0
    %924 = vmatprep.subr.mxu0 0.0
    %925 = vmatpush1.msra.mxu0 0.0
    %926 = vmatprep.subr.mxu0 0.0
    %927 = vmatpush1.msra.mxu0 0.0
    %928 = vmatprep.subr.mxu0 0.0
    %929 = vmatpush1.msra.mxu0 0.0
    %930 = vmatprep.subr.mxu0 0.0
    %931 = vmatpush1.msra.mxu0 0.0
    %932 = vmatprep.subr.mxu0 0.0
    %933 = vmatpush1.msra.mxu0 0.0
    %934 = vmatprep.subr.mxu0 0.0
    %935 = vmatpush1.msra.mxu0 0.0
    %936 = vmatprep.subr.mxu0 0.0
    %937 = vmatpush1.msra.mxu0 0.0
    %938 = vmatprep.subr.mxu0 0.0
    %939 = vmatpush1.msra.mxu0 0.0
    %940 = vmatprep.subr.mxu0 0.0
    %941 = vmatpush1.msra.mxu0 0.0
    %942 = vmatprep.subr.mxu0 0.0
    %943 = vmatpush1.msra.mxu0 0.0
    %944 = vmatprep.subr.mxu0 0.0
    %945 = vmatpush1.msra.mxu0 0.0
    %946 = vmatprep.subr.mxu0 0.0
    %947 = vmatpush1.msra.mxu0 0.0
    %948 = vmatprep.subr.mxu0 0.0
    %949 = vmatpush1.msra.mxu0 0.0
    %950 = vmatprep.mubr.f32.mxu0 0.0
    %951 = vmatmul.mubr.f32.gmra.mrb[0].mxu0 %v884
    %v952 = vpop.f32.mrb[0].mxu0
    %v953 = vadd.f32 0.0, %v952
    %v954 = vpop.f32.mrb[0].mxu0
    %v955 = vadd.f32 0.0, %v954
    %956 = vdwg.mxu0
    %v957 = vadd.f32 %v229, %v953
    %v958 = vadd.f32 %v231, %v955
    %v959 = vtanh.pop %v957
    %v960 = vtanh.pop %v958
    %v961 = vxor.u32 %v957, 2147483648
    %v962 = vxor.u32 %v958, 2147483648
    %v963 = vmul.f32 %v961, 1.442695
    %v964 = vpow.pop %v963
    %v965 = vmul.f32 %v962, 1.442695
    %v966 = vpow.pop %v965
    %v967 = vadd.f32 %v964, 1.0
    %v968 = vadd.f32 %v966, 1.0
    %v969 = vrcp.pop %v967
    %v970 = vmul.f32 1.0, %v969
    %v971 = vrcp.pop %v968
    %v972 = vmul.f32 1.0, %v971
    %v973 = vsel %vm262, %v959, %v970
    %v974 = vsel %vm263, %v960, %v972
    %v975 = vmul.f32 %v973, %v878
    %v976 = vmul.f32 %v973, %v974
    %978 = vrot.lane.b32.xlu0 %v976, 64
    %v979 = vpop.permute.xlu0 %978
    %v981 = vadd.f32 %v975, %v979
    %v982 = vtanh.pop %v981
    %v983 = vmul.f32 %v974, %v982
    %985 = vrot.lane.b32.xlu0 %v983, 64
    %v986 = vpop.permute.xlu0 %985
    %v987 = vsel %vm264, %v986, 0
    %989 = vmatprep.subr.mxu0 %v240
    %990 = vmatpush1.msra.mxu0 %v239
    %991 = vmatprep.subr.mxu0 %v242
    %992 = vmatpush1.msra.mxu0 %v241
    %993 = vmatprep.subr.mxu0 %v244
    %994 = vmatpush1.msra.mxu0 %v243
    %995 = vmatprep.subr.mxu0 %v246
    %996 = vmatpush1.msra.mxu0 %v245
    %997 = vmatprep.subr.mxu0 %v248
    %998 = vmatpush1.msra.mxu0 %v247
    %999 = vmatprep.subr.mxu0 %v250
    %1000 = vmatpush1.msra.mxu0 %v249
    %1001 = vmatprep.subr.mxu0 %v252
    %1002 = vmatpush1.msra.mxu0 %v251
    %1003 = vmatprep.subr.mxu0 %v254
    %1004 = vmatpush1.msra.mxu0 %v253
    %1005 = vmatprep.subr.mxu0 0.0
    %1006 = vmatpush1.msra.mxu0 0.0
    %1007 = vmatprep.subr.mxu0 0.0
    %1008 = vmatpush1.msra.mxu0 0.0
    %1009 = vmatprep.subr.mxu0 0.0
    %1010 = vmatpush1.msra.mxu0 0.0
    %1011 = vmatprep.subr.mxu0 0.0
    %1012 = vmatpush1.msra.mxu0 0.0
    %1013 = vmatprep.subr.mxu0 0.0
    %1014 = vmatpush1.msra.mxu0 0.0
    %1015 = vmatprep.subr.mxu0 0.0
    %1016 = vmatpush1.msra.mxu0 0.0
    %1017 = vmatprep.subr.mxu0 0.0
    %1018 = vmatpush1.msra.mxu0 0.0
    %1019 = vmatprep.subr.mxu0 0.0
    %1020 = vmatpush1.msra.mxu0 0.0
    %1021 = vmatprep.subr.mxu0 0.0
    %1022 = vmatpush1.msra.mxu0 0.0
    %1023 = vmatprep.subr.mxu0 0.0
    %1024 = vmatpush1.msra.mxu0 0.0
    %1025 = vmatprep.subr.mxu0 0.0
    %1026 = vmatpush1.msra.mxu0 0.0
    %1027 = vmatprep.subr.mxu0 0.0
    %1028 = vmatpush1.msra.mxu0 0.0
    %1029 = vmatprep.subr.mxu0 0.0
    %1030 = vmatpush1.msra.mxu0 0.0
    %1031 = vmatprep.subr.mxu0 0.0
    %1032 = vmatpush1.msra.mxu0 0.0
    %1033 = vmatprep.subr.mxu0 0.0
    %1034 = vmatpush1.msra.mxu0 0.0
    %1035 = vmatprep.subr.mxu0 0.0
    %1036 = vmatpush1.msra.mxu0 0.0
    %1037 = vmatprep.subr.mxu0 0.0
    %1038 = vmatpush1.msra.mxu0 0.0
    %1039 = vmatprep.subr.mxu0 0.0
    %1040 = vmatpush1.msra.mxu0 0.0
    %1041 = vmatprep.subr.mxu0 0.0
    %1042 = vmatpush1.msra.mxu0 0.0
    %1043 = vmatprep.subr.mxu0 0.0
    %1044 = vmatpush1.msra.mxu0 0.0
    %1045 = vmatprep.subr.mxu0 0.0
    %1046 = vmatpush1.msra.mxu0 0.0
    %1047 = vmatprep.subr.mxu0 0.0
    %1048 = vmatpush1.msra.mxu0 0.0
    %1049 = vmatprep.subr.mxu0 0.0
    %1050 = vmatpush1.msra.mxu0 0.0
    %1051 = vmatprep.subr.mxu0 0.0
    %1052 = vmatpush1.msra.mxu0 0.0
    %1053 = vmatprep.mubr.f32.mxu0 0.0
    %1054 = vmatmul.mubr.f32.gmra.mrb[0].mxu0 %v987
    %v1055 = vpop.f32.mrb[0].mxu0
    %v1056 = vadd.f32 0.0, %v1055
    %v1057 = vpop.f32.mrb[0].mxu0
    %v1058 = vadd.f32 0.0, %v1057
    %1059 = vdwg.mxu0
    %v1060 = vadd.f32 %v235, %v1056
    %v1061 = vadd.f32 %v237, %v1058
    %v1062 = vtanh.pop %v1060
    %v1063 = vtanh.pop %v1061
    %v1064 = vxor.u32 %v1060, 2147483648
    %v1065 = vxor.u32 %v1061, 2147483648
    %v1066 = vmul.f32 %v1064, 1.442695
    %v1067 = vpow.pop %v1066
    %v1068 = vmul.f32 %v1065, 1.442695
    %v1069 = vpow.pop %v1068
    %v1070 = vadd.f32 %v1067, 1.0
    %v1071 = vadd.f32 %v1069, 1.0
    %v1072 = vrcp.pop %v1070
    %v1073 = vmul.f32 1.0, %v1072
    %v1074 = vrcp.pop %v1071
    %v1075 = vmul.f32 1.0, %v1074
    %v1076 = vsel %vm262, %v1062, %v1073
    %v1077 = vsel %vm263, %v1063, %v1075
    %v1078 = vmul.f32 %v1076, %v981
    %v1079 = vmul.f32 %v1076, %v1077
    %1081 = vrot.lane.b32.xlu0 %v1079, 64
    %v1082 = vpop.permute.xlu0 %1081
    %v1084 = vadd.f32 %v1078, %v1082
    %v1085 = vtanh.pop %v1084
    %v1086 = vmul.f32 %v1077, %v1085
    %v1087 = vld [vmem:[#allocation5] sm:$0xff]
    %v1088 = vld [vmem:[#allocation5 + $0x8] sm:$0xff]
    %v1089 = vld [vmem:[#allocation5 + $0x10] sm:$0xff]
    %v1090 = vld [vmem:[#allocation5 + $0x18] sm:$0xff]
    %v1091 = vld [vmem:[#allocation5 + $0x20] sm:$0xff]
    %v1092 = vld [vmem:[#allocation5 + $0x28] sm:$0xff]
    %v1093 = vld [vmem:[#allocation5 + $0x30] sm:$0xff]
    %v1094 = vld [vmem:[#allocation5 + $0x38] sm:$0xff]
    %v1095 = vld [vmem:[%s5] sm:$0x1]
    %v1097 = vlaneseq
    %v1098 = vshrl.u32 %v1097, 7
    %v1099 = vsub.s32 0, %v1098
    %v1100 = vrot.slane %v1095, %v1099
    %1103 = vrot.lane.b32.xlu0 %v1086, 64
    %v1104 = vpop.permute.xlu0 %1103
    %v1105 = vsel %vm264, %v1104, 0
    %1107 = vmatprep.subr.mxu0 0.0
    %1108 = vmatpush1.msra.mxu0 %v1087
    %1109 = vmatprep.subr.mxu0 0.0
    %1110 = vmatpush1.msra.mxu0 %v1088
    %1111 = vmatprep.subr.mxu0 0.0
    %1112 = vmatpush1.msra.mxu0 %v1089
    %1113 = vmatprep.subr.mxu0 0.0
    %1114 = vmatpush1.msra.mxu0 %v1090
    %1115 = vmatprep.subr.mxu0 0.0
    %1116 = vmatpush1.msra.mxu0 %v1091
    %1117 = vmatprep.subr.mxu0 0.0
    %1118 = vmatpush1.msra.mxu0 %v1092
    %1119 = vmatprep.subr.mxu0 0.0
    %1120 = vmatpush1.msra.mxu0 %v1093
    %1121 = vmatprep.subr.mxu0 0.0
    %1122 = vmatpush1.msra.mxu0 %v1094
    %1123 = vmatprep.subr.mxu0 0.0
    %1124 = vmatpush1.msra.mxu0 0.0
    %1125 = vmatprep.subr.mxu0 0.0
    %1126 = vmatpush1.msra.mxu0 0.0
    %1127 = vmatprep.subr.mxu0 0.0
    %1128 = vmatpush1.msra.mxu0 0.0
    %1129 = vmatprep.subr.mxu0 0.0
    %1130 = vmatpush1.msra.mxu0 0.0
    %1131 = vmatprep.subr.mxu0 0.0
    %1132 = vmatpush1.msra.mxu0 0.0
    %1133 = vmatprep.subr.mxu0 0.0
    %1134 = vmatpush1.msra.mxu0 0.0
    %1135 = vmatprep.subr.mxu0 0.0
    %1136 = vmatpush1.msra.mxu0 0.0
    %1137 = vmatprep.subr.mxu0 0.0
    %1138 = vmatpush1.msra.mxu0 0.0
    %1139 = vmatprep.subr.mxu0 0.0
    %1140 = vmatpush1.msra.mxu0 0.0
    %1141 = vmatprep.subr.mxu0 0.0
    %1142 = vmatpush1.msra.mxu0 0.0
    %1143 = vmatprep.subr.mxu0 0.0
    %1144 = vmatpush1.msra.mxu0 0.0
    %1145 = vmatprep.subr.mxu0 0.0
    %1146 = vmatpush1.msra.mxu0 0.0
    %1147 = vmatprep.subr.mxu0 0.0
    %1148 = vmatpush1.msra.mxu0 0.0
    %1149 = vmatprep.subr.mxu0 0.0
    %1150 = vmatpush1.msra.mxu0 0.0
    %1151 = vmatprep.subr.mxu0 0.0
    %1152 = vmatpush1.msra.mxu0 0.0
    %1153 = vmatprep.subr.mxu0 0.0
    %1154 = vmatpush1.msra.mxu0 0.0
    %1155 = vmatprep.subr.mxu0 0.0
    %1156 = vmatpush1.msra.mxu0 0.0
    %1157 = vmatprep.subr.mxu0 0.0
    %1158 = vmatpush1.msra.mxu0 0.0
    %1159 = vmatprep.subr.mxu0 0.0
    %1160 = vmatpush1.msra.mxu0 0.0
    %1161 = vmatprep.subr.mxu0 0.0
    %1162 = vmatpush1.msra.mxu0 0.0
    %1163 = vmatprep.subr.mxu0 0.0
    %1164 = vmatpush1.msra.mxu0 0.0
    %1165 = vmatprep.subr.mxu0 0.0
    %1166 = vmatpush1.msra.mxu0 0.0
    %1167 = vmatprep.subr.mxu0 0.0
    %1168 = vmatpush1.msra.mxu0 0.0
    %1169 = vmatprep.subr.mxu0 0.0
    %1170 = vmatpush1.msra.mxu0 0.0
    %1171 = vmatprep.mubr.f32.mxu0 0.0
    %1172 = vmatmul.mubr.f32.gmra.mrb[0].mxu0 %v1105
    %v1173 = vpop.f32.mrb[0].mxu0
    %v1174 = vadd.f32 %v1100, %v1173
    %v1175 = vpop.f32.mrb[0].mxu0
    %1176 = vdwg.mxu0
    %v1177 = vmax.f32 %v1174, 0.0
    %v1178 = vld [vmem:[#allocation7] sm:$0xff]
    %v1179 = vld [vmem:[#allocation7 + $0x8] sm:$0xff]
    %v1180 = vld [vmem:[#allocation7 + $0x10] sm:$0xff]
    %v1181 = vld [vmem:[#allocation7 + $0x18] sm:$0xff]
    %v1182 = vld [vmem:[#allocation7 + $0x20] sm:$0xff]
    %v1183 = vld [vmem:[#allocation7 + $0x28] sm:$0xff]
    %v1184 = vld [vmem:[#allocation7 + $0x30] sm:$0xff]
    %v1185 = vld [vmem:[#allocation7 + $0x38] sm:$0xff]
    %v1186 = vld [vmem:[%s7] sm:$0x1]
    %v1188 = vlaneseq
    %v1189 = vshrl.u32 %v1188, 7
    %v1190 = vsub.s32 0, %v1189
    %v1191 = vrot.slane %v1186, %v1190
    %v1194 = vsel %vm264, %v1177, 0
    %1196 = vmatprep.subr.mxu0 0.0
    %1197 = vmatpush1.msra.mxu0 %v1178
    %1198 = vmatprep.subr.mxu0 0.0
    %1199 = vmatpush1.msra.mxu0 %v1179
    %1200 = vmatprep.subr.mxu0 0.0
    %1201 = vmatpush1.msra.mxu0 %v1180
    %1202 = vmatprep.subr.mxu0 0.0
    %1203 = vmatpush1.msra.mxu0 %v1181
    %1204 = vmatprep.subr.mxu0 0.0
    %1205 = vmatpush1.msra.mxu0 %v1182
    %1206 = vmatprep.subr.mxu0 0.0
    %1207 = vmatpush1.msra.mxu0 %v1183
    %1208 = vmatprep.subr.mxu0 0.0
    %1209 = vmatpush1.msra.mxu0 %v1184
    %1210 = vmatprep.subr.mxu0 0.0
    %1211 = vmatpush1.msra.mxu0 %v1185
    %1212 = vmatprep.subr.mxu0 0.0
    %1213 = vmatpush1.msra.mxu0 0.0
    %1214 = vmatprep.subr.mxu0 0.0
    %1215 = vmatpush1.msra.mxu0 0.0
    %1216 = vmatprep.subr.mxu0 0.0
    %1217 = vmatpush1.msra.mxu0 0.0
    %1218 = vmatprep.subr.mxu0 0.0
    %1219 = vmatpush1.msra.mxu0 0.0
    %1220 = vmatprep.subr.mxu0 0.0
    %1221 = vmatpush1.msra.mxu0 0.0
    %1222 = vmatprep.subr.mxu0 0.0
    %1223 = vmatpush1.msra.mxu0 0.0
    %1224 = vmatprep.subr.mxu0 0.0
    %1225 = vmatpush1.msra.mxu0 0.0
    %1226 = vmatprep.subr.mxu0 0.0
    %1227 = vmatpush1.msra.mxu0 0.0
    %1228 = vmatprep.subr.mxu0 0.0
    %1229 = vmatpush1.msra.mxu0 0.0
    %1230 = vmatprep.subr.mxu0 0.0
    %1231 = vmatpush1.msra.mxu0 0.0
    %1232 = vmatprep.subr.mxu0 0.0
    %1233 = vmatpush1.msra.mxu0 0.0
    %1234 = vmatprep.subr.mxu0 0.0
    %1235 = vmatpush1.msra.mxu0 0.0
    %1236 = vmatprep.subr.mxu0 0.0
    %1237 = vmatpush1.msra.mxu0 0.0
    %1238 = vmatprep.subr.mxu0 0.0
    %1239 = vmatpush1.msra.mxu0 0.0
    %1240 = vmatprep.subr.mxu0 0.0
    %1241 = vmatpush1.msra.mxu0 0.0
    %1242 = vmatprep.subr.mxu0 0.0
    %1243 = vmatpush1.msra.mxu0 0.0
    %1244 = vmatprep.subr.mxu0 0.0
    %1245 = vmatpush1.msra.mxu0 0.0
    %1246 = vmatprep.subr.mxu0 0.0
    %1247 = vmatpush1.msra.mxu0 0.0
    %1248 = vmatprep.subr.mxu0 0.0
    %1249 = vmatpush1.msra.mxu0 0.0
    %1250 = vmatprep.subr.mxu0 0.0
    %1251 = vmatpush1.msra.mxu0 0.0
    %1252 = vmatprep.subr.mxu0 0.0
    %1253 = vmatpush1.msra.mxu0 0.0
    %1254 = vmatprep.subr.mxu0 0.0
    %1255 = vmatpush1.msra.mxu0 0.0
    %1256 = vmatprep.subr.mxu0 0.0
    %1257 = vmatpush1.msra.mxu0 0.0
    %1258 = vmatprep.subr.mxu0 0.0
    %1259 = vmatpush1.msra.mxu0 0.0
    %1260 = vmatprep.mubr.f32.mxu0 0.0
    %1261 = vmatmul.mubr.f32.gmra.mrb[0].mxu0 %v1194
    %v1262 = vpop.f32.mrb[0].mxu0
    %v1263 = vadd.f32 %v1191, %v1262
    %v1264 = vpop.f32.mrb[0].mxu0
    %1265 = vdwg.mxu0
    %1266 = vst [vmem:[#allocation8] sm:$0xff] %v1263
    // Predicated region
    $region46: #{tpu_custom_call.1} parent=1 // pred_check
      _
    $region47: #{tpu_custom_call.1} parent=1 // pred_check_branch
      %1268 = sbr.rel (0) target = $region49
    $region48: #{tpu_custom_call.1} parent=1 // pred_region
      %s1270 = ssub.s32 128, 128
      %1271 = vsyncadd [#allocation4], %s1270
      %s1273 = sshll.u32 [#allocation8], 4
      %s1274 = int_to_ptr.vmem [resolvable:$true] %s1273
      %1276 = dma.vmem_to_hbm [thread:$0]  %s1274, 128, %s8, [#allocation4]
    $region49: #{tpu_custom_call.1} parent=1 // pred_fallthru
      _
    // Predicated region
    $region50: #{tpu_custom_call.1} parent=1 // pred_check
      _
    $region51: #{tpu_custom_call.1} parent=1 // pred_check_branch
      %1278 = sbr.rel (0) target = $region53
    $region52: #{tpu_custom_call.1} parent=1 // pred_region
      %1279 = dma.done [#allocation4], 128
    $region53: #{tpu_custom_call.1} parent=1 // pred_fallthru
      _
    %1280 = vsyncpa [#allocation3], 1
    %1281 = vsyncpa [#allocation6], 1
    %1282 = vsyncpa [#allocation4], 1

</llo_original>
